<compile_context>
chip_gen: v5e
topology: v5e:2x2
jax: 0.10.0
libtpu: 0.0.40
codegen_flags: <defaults>
</compile_context>

<pallas_src>
import functools

import jax
import jax.numpy as jnp
from jax.experimental import pallas as pl
from jax.experimental.pallas import tpu as pltpu


def attention_kernel(x_ref, qkv_w_ref, proj_w_ref, proj_b_ref,
                     x_out_ref, cls_out_ref,
                     attn_scr,
                     *, bt, tokens, dim, num_heads, head_dim, scale, n_pad):
    # x_ref: (bt*tokens, dim) -- bt images flattened along the row axis.
    x = x_ref[...]
    qkv = jnp.dot(x, qkv_w_ref[...], preferred_element_type=jnp.float32)   # (bt*N, 3C)

    # Fold the softmax scale into q once.
    q = qkv[:, 0:dim] * scale
    k = qkv[:, dim:2 * dim]
    v = qkv[:, 2 * dim:3 * dim]

    # Hoisted padding constant (JAX does not CSE broadcast_in_dim inside loops).
    pad_zeros = (jnp.zeros((1, n_pad - tokens), jnp.float32)
                 if n_pad > tokens else None)

    for b in range(bt):
        r0 = b * tokens
        # Per-token accumulators for the head-importance-weighted CLS attention.
        num = jnp.zeros((1, tokens), jnp.float32)
        den = jnp.zeros((1, tokens), jnp.float32)

        for h in range(num_heads):
            c0 = h * head_dim
            qh = q[r0:r0 + tokens, c0:c0 + head_dim]
            kh = k[r0:r0 + tokens, c0:c0 + head_dim]
            vh = v[r0:r0 + tokens, c0:c0 + head_dim]

            s = jnp.dot(qh, kh.T, preferred_element_type=jnp.float32)      # (N, N)
            s = s - jnp.max(s, axis=-1, keepdims=True)
            e = jnp.exp(s)
            p = e * pl.reciprocal(jnp.sum(e, axis=-1, keepdims=True))      # softmax
            oh = jnp.dot(p, vh, preferred_element_type=jnp.float32)        # (N, hd)

            # Per-head result straight to VMEM scratch -> bounded live ranges.
            attn_scr[pl.ds(r0, tokens), pl.ds(c0, head_dim)] = oh

            # Per-token head norm, moved to a lane-major row (tiny XLU relayout).
            hi_row = jnp.sqrt(jnp.transpose(
                jnp.sum(oh * oh, axis=-1, keepdims=True)))                 # (1, N)
            num = num + p[0:1, :] * hi_row                                 # CLS row * norm
            den = den + hi_row

        cls_vec = num * pl.reciprocal(den + 1e-8)                          # (1, N)
        if pad_zeros is not None:                                          # lane-dense slab
            cls_vec = jnp.concatenate([cls_vec, pad_zeros], axis=-1)
        # Column 0 (CLS->CLS) and the padding are discarded by the wrapper.
        cls_out_ref[b] = cls_vec

    # Output projection on the whole (bt*N, C) slab (single big-K MXU matmul).
    y = jnp.dot(attn_scr[...], proj_w_ref[...],
                preferred_element_type=jnp.float32) + proj_b_ref[...]
    x_out_ref[...] = y


PARAM_ORDER = ("qkv_w", "proj_w", "proj_b")


def attention_forward(x, params, num_heads, *, batch_block=None):
    B, N, C = x.shape
    head_dim = C // num_heads
    scale = head_dim ** -0.5

    bt = batch_block if batch_block is not None else min(B, 8)
    assert B % bt == 0, "batch must be divisible by the batch tile"
    n_pad = pl.cdiv(N, 128) * 128          # lane-dense cls output width

    kernel = functools.partial(
        attention_kernel, bt=bt, tokens=N, dim=C, num_heads=num_heads,
        head_dim=head_dim, scale=scale, n_pad=n_pad)

    x2d = x.reshape(B * N, C)              # layout plumbing done in the wrapper

    # Explicit VMEM budget: pipelined (2x) I/O blocks + weights + scratch + margin.
    weight_bytes = sum(int(params[k].size) * 4 for k in PARAM_ORDER)
    io_bytes = (2 * bt * N * C + bt * n_pad) * 4
    scratch_bytes = bt * N * C * 4
    needed = 2 * (weight_bytes + io_bytes) + scratch_bytes + (8 << 20)
    vmem_limit = int(min(max(needed, 16 << 20), 64 << 20))

    in_specs = [pl.BlockSpec((bt * N, C), lambda i: (i, 0))]
    # Weights are grid-invariant (constant index_map); all are 2-D.
    # TODO(synk): at ViT-B/L scale, single-buffer (pl.Buffered(1)) or stream these.
    in_specs += [pl.BlockSpec(params[k].shape, lambda i: (0, 0)) for k in PARAM_ORDER]

    x_out2d, cls_full = pl.pallas_call(
        kernel,
        out_shape=(jax.ShapeDtypeStruct((B * N, C), jnp.float32),
                   jax.ShapeDtypeStruct((B, 1, n_pad), jnp.float32)),
        grid_spec=pltpu.PrefetchScalarGridSpec(
            num_scalar_prefetch=0,
            grid=(B // bt,),
            in_specs=in_specs,
            out_specs=(pl.BlockSpec((bt * N, C), lambda i: (i, 0)),
                       pl.BlockSpec((bt, 1, n_pad), lambda i: (i, 0, 0))),
            scratch_shapes=[pltpu.VMEM((bt * N, C), jnp.float32)]),        # attn output
        compiler_params=pltpu.CompilerParams(
            dimension_semantics=("parallel",),
            vmem_limit_bytes=vmem_limit),
    )(x2d, *[params[k] for k in PARAM_ORDER])

    return x_out2d.reshape(B, N, C), cls_full[:, 0, 1:N]   # (B,N,C), (B,N-1)


def ref_attention(x, params, num_heads):
    # Pure-JAX mirror of the PyTorch Attention.forward (dropouts are identity).
    B, N, C = x.shape
    hd = C // num_heads
    scale = hd ** -0.5
    qkv = (x @ params["qkv_w"]).reshape(B, N, 3, num_heads, hd).transpose(2, 0, 3, 1, 4)
    q, k, v = qkv[0], qkv[1], qkv[2]
    attn = jnp.einsum("bhnd,bhmd->bhnm", q, k) * scale
    attn = jax.nn.softmax(attn, axis=-1)
    attn_out = jnp.einsum("bhnm,bhmd->bhnd", attn, v)
    y = attn_out.transpose(0, 2, 1, 3).reshape(B, N, C) @ params["proj_w"] + params["proj_b"]
    cls_attn = attn[:, :, 0, 1:]
    hi = jnp.linalg.norm(attn_out[..., 1:, :], axis=-1)
    hi = hi / (hi.sum(axis=1, keepdims=True) + 1e-8)
    cls = (cls_attn * hi).sum(axis=1)
    return y, cls


def init_params(key, dim):
    ks = jax.random.split(key, 3)
    w = lambda k, shp: 0.02 * jax.random.normal(k, shp, jnp.float32)
    return {
        "qkv_w": w(ks[0], (dim, 3 * dim)),           # qkv_bias=False
        "proj_w": w(ks[1], (dim, dim)),
        "proj_b": w(ks[2], (1, dim)),
    }


if __name__ == "__main__":
    B, N, C, H = 2, 8, 32, 4        # batch, tokens (1 CLS + 7 patches), dim, heads
    key = jax.random.PRNGKey(0)
    kx, kp = jax.random.split(key)
    x = jax.random.normal(kx, (B, N, C), jnp.float32)
    params = init_params(kp, C)

    x_out, cls_out = attention_forward(x, params, num_heads=H)
    jax.block_until_ready((x_out, cls_out))

    x_ref, cls_ref = ref_attention(x, params, num_heads=H)
    assert x_out.shape == (B, N, C) and cls_out.shape == (B, N - 1)
    assert jnp.allclose(x_out, x_ref, atol=1e-4, rtol=1e-4)
    assert jnp.allclose(cls_out, cls_ref, atol=1e-4, rtol=1e-4)
    print("KERNEL_OK")
</pallas_src>

<mosaic_0001>
module attributes {stable_mosaic.version = 11 : i64} {
  func.func @attention_kernel(%arg0: i32, %arg1: memref<16x32xf32, #tpu.memory_space<vmem>>, %arg2: memref<32x96xf32, #tpu.memory_space<vmem>>, %arg3: memref<32x32xf32, #tpu.memory_space<vmem>>, %arg4: memref<1x32xf32, #tpu.memory_space<vmem>>, %arg5: memref<16x32xf32, #tpu.memory_space<vmem>>, %arg6: memref<2x1x128xf32, #tpu.memory_space<vmem>>, %arg7: memref<16x32xf32, #tpu.memory_space<vmem>>) attributes {dimension_semantics = [#tpu.dimension_semantics<parallel>], iteration_bounds = array<i64: 1>, scalar_prefetch = 0 : i64, scratch_operands = 1 : i64, tpu.core_type = #tpu.core_type<tc>, window_params = [{transform_indices = @transform_0, window_bounds = array<i64: 16, 32>}, {pipeline_mode = #tpu.pipeline_mode<synchronous>, transform_indices = @transform_1, window_bounds = array<i64: 32, 96>}, {pipeline_mode = #tpu.pipeline_mode<synchronous>, transform_indices = @transform_2, window_bounds = array<i64: 32, 32>}, {pipeline_mode = #tpu.pipeline_mode<synchronous>, transform_indices = @transform_3, window_bounds = array<i64: 1, 32>}, {transform_indices = @transform_4, window_bounds = array<i64: 16, 32>}, {transform_indices = @transform_5, window_bounds = array<i64: 2, 1, 128>}]} {
    %c0 = arith.constant 0 : index
    %c0_0 = arith.constant 0 : index
    %0 = vector.load %arg1[%c0, %c0_0] : memref<16x32xf32, #tpu.memory_space<vmem>>, vector<16x32xf32>
    %c0_1 = arith.constant 0 : index
    %c0_2 = arith.constant 0 : index
    %1 = vector.load %arg2[%c0_1, %c0_2] : memref<32x96xf32, #tpu.memory_space<vmem>>, vector<32x96xf32>
    %cst = arith.constant dense<0.000000e+00> : vector<16x96xf32>
    %2 = tpu.matmul %0, %1, %cst {dimension_numbers = #tpu.dot_dimension_numbers<[1], [0], [0], [1], [0, 0, 1, 1], [], []>} : vector<16x32xf32>, vector<32x96xf32>, vector<16x96xf32> -> vector<16x96xf32>
    %3 = vector.extract_strided_slice %2 {offsets = [0, 0], sizes = [16, 32], strides = [1, 1]} : vector<16x96xf32> to vector<16x32xf32>
    %cst_3 = arith.constant 0.353553385 : f32
    %4 = vector.broadcast %cst_3 : f32 to vector<16x32xf32>
    %5 = arith.mulf %3, %4 : vector<16x32xf32>
    %6 = vector.extract_strided_slice %2 {offsets = [0, 32], sizes = [16, 32], strides = [1, 1]} : vector<16x96xf32> to vector<16x32xf32>
    %7 = vector.extract_strided_slice %2 {offsets = [0, 64], sizes = [16, 32], strides = [1, 1]} : vector<16x96xf32> to vector<16x32xf32>
    %cst_4 = arith.constant 0.000000e+00 : f32
    %8 = vector.broadcast %cst_4 : f32 to vector<1x120xf32>
    %cst_5 = arith.constant 0.000000e+00 : f32
    %9 = vector.broadcast %cst_5 : f32 to vector<1x8xf32>
    %cst_6 = arith.constant 0.000000e+00 : f32
    %10 = vector.broadcast %cst_6 : f32 to vector<1x8xf32>
    %11 = vector.extract_strided_slice %5 {offsets = [0, 0], sizes = [8, 8], strides = [1, 1]} : vector<16x32xf32> to vector<8x8xf32>
    %12 = vector.extract_strided_slice %6 {offsets = [0, 0], sizes = [8, 8], strides = [1, 1]} : vector<16x32xf32> to vector<8x8xf32>
    %13 = vector.extract_strided_slice %7 {offsets = [0, 0], sizes = [8, 8], strides = [1, 1]} : vector<16x32xf32> to vector<8x8xf32>
    %14 = tpu.transpose %12, [1, 0] : vector<8x8xf32> -> vector<8x8xf32>
    %cst_7 = arith.constant dense<0.000000e+00> : vector<8x8xf32>
    %15 = tpu.matmul %11, %14, %cst_7 {dimension_numbers = #tpu.dot_dimension_numbers<[1], [0], [0], [1], [0, 0, 1, 1], [], []>} : vector<8x8xf32>, vector<8x8xf32>, vector<8x8xf32> -> vector<8x8xf32>
    %cst_8 = arith.constant dense<0xFF800000> : vector<8xf32>
    %16 = vector.multi_reduction <maximumf>, %15, %cst_8 [1] : vector<8x8xf32> to vector<8xf32>
    %17 = vector.shape_cast %16 : vector<8xf32> to vector<8x1xf32>
    %18 = vector.broadcast %17 : vector<8x1xf32> to vector<8x8xf32>
    %19 = arith.subf %15, %18 : vector<8x8xf32>
    %20 = math.exp %19 : vector<8x8xf32>
    %cst_9 = arith.constant dense<0.000000e+00> : vector<8xf32>
    %21 = vector.multi_reduction <add>, %20, %cst_9 [1] : vector<8x8xf32> to vector<8xf32>
    %22 = vector.shape_cast %21 : vector<8xf32> to vector<8x1xf32>
    %23 = tpu.reciprocal %22 : vector<8x1xf32> -> vector<8x1xf32>
    %24 = vector.broadcast %23 : vector<8x1xf32> to vector<8x8xf32>
    %25 = arith.mulf %20, %24 : vector<8x8xf32>
    %cst_10 = arith.constant dense<0.000000e+00> : vector<8x8xf32>
    %26 = tpu.matmul %25, %13, %cst_10 {dimension_numbers = #tpu.dot_dimension_numbers<[1], [0], [0], [1], [0, 0, 1, 1], [], []>} : vector<8x8xf32>, vector<8x8xf32>, vector<8x8xf32> -> vector<8x8xf32>
    %c0_11 = arith.constant 0 : index
    %c0_12 = arith.constant 0 : index
    %27 = vector.load %arg7[%c0_11, %c0_12] : memref<16x32xf32, #tpu.memory_space<vmem>>, vector<8x8xf32>
    tpu.vector_store %arg7[%c0_11, %c0_12], %26 {strides = array<i32>} : memref<16x32xf32, #tpu.memory_space<vmem>>, vector<8x8xf32>,
    %28 = arith.mulf %26, %26 : vector<8x8xf32>
    %cst_13 = arith.constant dense<0.000000e+00> : vector<8xf32>
    %29 = vector.multi_reduction <add>, %28, %cst_13 [1] : vector<8x8xf32> to vector<8xf32>
    %30 = vector.shape_cast %29 : vector<8xf32> to vector<8x1xf32>
    %31 = tpu.transpose %30, [1, 0] : vector<8x1xf32> -> vector<1x8xf32>
    %32 = math.sqrt %31 : vector<1x8xf32>
    %33 = vector.extract_strided_slice %25 {offsets = [0, 0], sizes = [1, 8], strides = [1, 1]} : vector<8x8xf32> to vector<1x8xf32>
    %34 = arith.mulf %33, %32 : vector<1x8xf32>
    %35 = arith.addf %9, %34 : vector<1x8xf32>
    %36 = arith.addf %10, %32 : vector<1x8xf32>
    %37 = vector.extract_strided_slice %5 {offsets = [0, 8], sizes = [8, 8], strides = [1, 1]} : vector<16x32xf32> to vector<8x8xf32>
    %38 = vector.extract_strided_slice %6 {offsets = [0, 8], sizes = [8, 8], strides = [1, 1]} : vector<16x32xf32> to vector<8x8xf32>
    %39 = vector.extract_strided_slice %7 {offsets = [0, 8], sizes = [8, 8], strides = [1, 1]} : vector<16x32xf32> to vector<8x8xf32>
    %40 = tpu.transpose %38, [1, 0] : vector<8x8xf32> -> vector<8x8xf32>
    %cst_14 = arith.constant dense<0.000000e+00> : vector<8x8xf32>
    %41 = tpu.matmul %37, %40, %cst_14 {dimension_numbers = #tpu.dot_dimension_numbers<[1], [0], [0], [1], [0, 0, 1, 1], [], []>} : vector<8x8xf32>, vector<8x8xf32>, vector<8x8xf32> -> vector<8x8xf32>
    %cst_15 = arith.constant dense<0xFF800000> : vector<8xf32>
    %42 = vector.multi_reduction <maximumf>, %41, %cst_15 [1] : vector<8x8xf32> to vector<8xf32>
    %43 = vector.shape_cast %42 : vector<8xf32> to vector<8x1xf32>
    %44 = vector.broadcast %43 : vector<8x1xf32> to vector<8x8xf32>
    %45 = arith.subf %41, %44 : vector<8x8xf32>
    %46 = math.exp %45 : vector<8x8xf32>
    %cst_16 = arith.constant dense<0.000000e+00> : vector<8xf32>
    %47 = vector.multi_reduction <add>, %46, %cst_16 [1] : vector<8x8xf32> to vector<8xf32>
    %48 = vector.shape_cast %47 : vector<8xf32> to vector<8x1xf32>
    %49 = tpu.reciprocal %48 : vector<8x1xf32> -> vector<8x1xf32>
    %50 = vector.broadcast %49 : vector<8x1xf32> to vector<8x8xf32>
    %51 = arith.mulf %46, %50 : vector<8x8xf32>
    %cst_17 = arith.constant dense<0.000000e+00> : vector<8x8xf32>
    %52 = tpu.matmul %51, %39, %cst_17 {dimension_numbers = #tpu.dot_dimension_numbers<[1], [0], [0], [1], [0, 0, 1, 1], [], []>} : vector<8x8xf32>, vector<8x8xf32>, vector<8x8xf32> -> vector<8x8xf32>
    %c0_18 = arith.constant 0 : index
    %c8 = arith.constant 8 : index
    %53 = vector.load %arg7[%c0_18, %c8] : memref<16x32xf32, #tpu.memory_space<vmem>>, vector<8x8xf32>
    tpu.vector_store %arg7[%c0_18, %c8], %52 {strides = array<i32>} : memref<16x32xf32, #tpu.memory_space<vmem>>, vector<8x8xf32>,
    %54 = arith.mulf %52, %52 : vector<8x8xf32>
    %cst_19 = arith.constant dense<0.000000e+00> : vector<8xf32>
    %55 = vector.multi_reduction <add>, %54, %cst_19 [1] : vector<8x8xf32> to vector<8xf32>
    %56 = vector.shape_cast %55 : vector<8xf32> to vector<8x1xf32>
    %57 = tpu.transpose %56, [1, 0] : vector<8x1xf32> -> vector<1x8xf32>
    %58 = math.sqrt %57 : vector<1x8xf32>
    %59 = vector.extract_strided_slice %51 {offsets = [0, 0], sizes = [1, 8], strides = [1, 1]} : vector<8x8xf32> to vector<1x8xf32>
    %60 = arith.mulf %59, %58 : vector<1x8xf32>
    %61 = arith.addf %35, %60 : vector<1x8xf32>
    %62 = arith.addf %36, %58 : vector<1x8xf32>
    %63 = vector.extract_strided_slice %5 {offsets = [0, 16], sizes = [8, 8], strides = [1, 1]} : vector<16x32xf32> to vector<8x8xf32>
    %64 = vector.extract_strided_slice %6 {offsets = [0, 16], sizes = [8, 8], strides = [1, 1]} : vector<16x32xf32> to vector<8x8xf32>
    %65 = vector.extract_strided_slice %7 {offsets = [0, 16], sizes = [8, 8], strides = [1, 1]} : vector<16x32xf32> to vector<8x8xf32>
    %66 = tpu.transpose %64, [1, 0] : vector<8x8xf32> -> vector<8x8xf32>
    %cst_20 = arith.constant dense<0.000000e+00> : vector<8x8xf32>
    %67 = tpu.matmul %63, %66, %cst_20 {dimension_numbers = #tpu.dot_dimension_numbers<[1], [0], [0], [1], [0, 0, 1, 1], [], []>} : vector<8x8xf32>, vector<8x8xf32>, vector<8x8xf32> -> vector<8x8xf32>
    %cst_21 = arith.constant dense<0xFF800000> : vector<8xf32>
    %68 = vector.multi_reduction <maximumf>, %67, %cst_21 [1] : vector<8x8xf32> to vector<8xf32>
    %69 = vector.shape_cast %68 : vector<8xf32> to vector<8x1xf32>
    %70 = vector.broadcast %69 : vector<8x1xf32> to vector<8x8xf32>
    %71 = arith.subf %67, %70 : vector<8x8xf32>
    %72 = math.exp %71 : vector<8x8xf32>
    %cst_22 = arith.constant dense<0.000000e+00> : vector<8xf32>
    %73 = vector.multi_reduction <add>, %72, %cst_22 [1] : vector<8x8xf32> to vector<8xf32>
    %74 = vector.shape_cast %73 : vector<8xf32> to vector<8x1xf32>
    %75 = tpu.reciprocal %74 : vector<8x1xf32> -> vector<8x1xf32>
    %76 = vector.broadcast %75 : vector<8x1xf32> to vector<8x8xf32>
    %77 = arith.mulf %72, %76 : vector<8x8xf32>
    %cst_23 = arith.constant dense<0.000000e+00> : vector<8x8xf32>
    %78 = tpu.matmul %77, %65, %cst_23 {dimension_numbers = #tpu.dot_dimension_numbers<[1], [0], [0], [1], [0, 0, 1, 1], [], []>} : vector<8x8xf32>, vector<8x8xf32>, vector<8x8xf32> -> vector<8x8xf32>
    %c0_24 = arith.constant 0 : index
    %c16 = arith.constant 16 : index
    %79 = vector.load %arg7[%c0_24, %c16] : memref<16x32xf32, #tpu.memory_space<vmem>>, vector<8x8xf32>
    tpu.vector_store %arg7[%c0_24, %c16], %78 {strides = array<i32>} : memref<16x32xf32, #tpu.memory_space<vmem>>, vector<8x8xf32>,
    %80 = arith.mulf %78, %78 : vector<8x8xf32>
    %cst_25 = arith.constant dense<0.000000e+00> : vector<8xf32>
    %81 = vector.multi_reduction <add>, %80, %cst_25 [1] : vector<8x8xf32> to vector<8xf32>
    %82 = vector.shape_cast %81 : vector<8xf32> to vector<8x1xf32>
    %83 = tpu.transpose %82, [1, 0] : vector<8x1xf32> -> vector<1x8xf32>
    %84 = math.sqrt %83 : vector<1x8xf32>
    %85 = vector.extract_strided_slice %77 {offsets = [0, 0], sizes = [1, 8], strides = [1, 1]} : vector<8x8xf32> to vector<1x8xf32>
    %86 = arith.mulf %85, %84 : vector<1x8xf32>
    %87 = arith.addf %61, %86 : vector<1x8xf32>
    %88 = arith.addf %62, %84 : vector<1x8xf32>
    %89 = vector.extract_strided_slice %5 {offsets = [0, 24], sizes = [8, 8], strides = [1, 1]} : vector<16x32xf32> to vector<8x8xf32>
    %90 = vector.extract_strided_slice %6 {offsets = [0, 24], sizes = [8, 8], strides = [1, 1]} : vector<16x32xf32> to vector<8x8xf32>
    %91 = vector.extract_strided_slice %7 {offsets = [0, 24], sizes = [8, 8], strides = [1, 1]} : vector<16x32xf32> to vector<8x8xf32>
    %92 = tpu.transpose %90, [1, 0] : vector<8x8xf32> -> vector<8x8xf32>
    %cst_26 = arith.constant dense<0.000000e+00> : vector<8x8xf32>
    %93 = tpu.matmul %89, %92, %cst_26 {dimension_numbers = #tpu.dot_dimension_numbers<[1], [0], [0], [1], [0, 0, 1, 1], [], []>} : vector<8x8xf32>, vector<8x8xf32>, vector<8x8xf32> -> vector<8x8xf32>
    %cst_27 = arith.constant dense<0xFF800000> : vector<8xf32>
    %94 = vector.multi_reduction <maximumf>, %93, %cst_27 [1] : vector<8x8xf32> to vector<8xf32>
    %95 = vector.shape_cast %94 : vector<8xf32> to vector<8x1xf32>
    %96 = vector.broadcast %95 : vector<8x1xf32> to vector<8x8xf32>
    %97 = arith.subf %93, %96 : vector<8x8xf32>
    %98 = math.exp %97 : vector<8x8xf32>
    %cst_28 = arith.constant dense<0.000000e+00> : vector<8xf32>
    %99 = vector.multi_reduction <add>, %98, %cst_28 [1] : vector<8x8xf32> to vector<8xf32>
    %100 = vector.shape_cast %99 : vector<8xf32> to vector<8x1xf32>
    %101 = tpu.reciprocal %100 : vector<8x1xf32> -> vector<8x1xf32>
    %102 = vector.broadcast %101 : vector<8x1xf32> to vector<8x8xf32>
    %103 = arith.mulf %98, %102 : vector<8x8xf32>
    %cst_29 = arith.constant dense<0.000000e+00> : vector<8x8xf32>
    %104 = tpu.matmul %103, %91, %cst_29 {dimension_numbers = #tpu.dot_dimension_numbers<[1], [0], [0], [1], [0, 0, 1, 1], [], []>} : vector<8x8xf32>, vector<8x8xf32>, vector<8x8xf32> -> vector<8x8xf32>
    %c0_30 = arith.constant 0 : index
    %c24 = arith.constant 24 : index
    %105 = vector.load %arg7[%c0_30, %c24] : memref<16x32xf32, #tpu.memory_space<vmem>>, vector<8x8xf32>
    tpu.vector_store %arg7[%c0_30, %c24], %104 {strides = array<i32>} : memref<16x32xf32, #tpu.memory_space<vmem>>, vector<8x8xf32>,
    %106 = arith.mulf %104, %104 : vector<8x8xf32>
    %cst_31 = arith.constant dense<0.000000e+00> : vector<8xf32>
    %107 = vector.multi_reduction <add>, %106, %cst_31 [1] : vector<8x8xf32> to vector<8xf32>
    %108 = vector.shape_cast %107 : vector<8xf32> to vector<8x1xf32>
    %109 = tpu.transpose %108, [1, 0] : vector<8x1xf32> -> vector<1x8xf32>
    %110 = math.sqrt %109 : vector<1x8xf32>
    %111 = vector.extract_strided_slice %103 {offsets = [0, 0], sizes = [1, 8], strides = [1, 1]} : vector<8x8xf32> to vector<1x8xf32>
    %112 = arith.mulf %111, %110 : vector<1x8xf32>
    %113 = arith.addf %87, %112 : vector<1x8xf32>
    %114 = arith.addf %88, %110 : vector<1x8xf32>
    %cst_32 = arith.constant 9.99999993E-9 : f32
    %115 = vector.broadcast %cst_32 : f32 to vector<1x8xf32>
    %116 = arith.addf %114, %115 : vector<1x8xf32>
    %117 = tpu.reciprocal %116 : vector<1x8xf32> -> vector<1x8xf32>
    %118 = arith.mulf %113, %117 : vector<1x8xf32>
    %119 = tpu.concatenate %118, %8 in 1 : vector<1x8xf32>, vector<1x120xf32> -> vector<1x128xf32>
    %c0_33 = arith.constant 0 : index
    %c0_34 = arith.constant 0 : index
    %c0_35 = arith.constant 0 : index
    %120 = vector.load %arg6[%c0_33, %c0_34, %c0_35] : memref<2x1x128xf32, #tpu.memory_space<vmem>>, vector<1x1x128xf32>
    %121 = vector.shape_cast %120 : vector<1x1x128xf32> to vector<1x128xf32>
    %122 = vector.shape_cast %119 : vector<1x128xf32> to vector<1x1x128xf32>
    tpu.vector_store %arg6[%c0_33, %c0_34, %c0_35], %122 {strides = array<i32>} : memref<2x1x128xf32, #tpu.memory_space<vmem>>, vector<1x1x128xf32>,
    %cst_36 = arith.constant 0.000000e+00 : f32
    %123 = vector.broadcast %cst_36 : f32 to vector<1x8xf32>
    %cst_37 = arith.constant 0.000000e+00 : f32
    %124 = vector.broadcast %cst_37 : f32 to vector<1x8xf32>
    %125 = vector.extract_strided_slice %5 {offsets = [8, 0], sizes = [8, 8], strides = [1, 1]} : vector<16x32xf32> to vector<8x8xf32>
    %126 = vector.extract_strided_slice %6 {offsets = [8, 0], sizes = [8, 8], strides = [1, 1]} : vector<16x32xf32> to vector<8x8xf32>
    %127 = vector.extract_strided_slice %7 {offsets = [8, 0], sizes = [8, 8], strides = [1, 1]} : vector<16x32xf32> to vector<8x8xf32>
    %128 = tpu.transpose %126, [1, 0] : vector<8x8xf32> -> vector<8x8xf32>
    %cst_38 = arith.constant dense<0.000000e+00> : vector<8x8xf32>
    %129 = tpu.matmul %125, %128, %cst_38 {dimension_numbers = #tpu.dot_dimension_numbers<[1], [0], [0], [1], [0, 0, 1, 1], [], []>} : vector<8x8xf32>, vector<8x8xf32>, vector<8x8xf32> -> vector<8x8xf32>
    %cst_39 = arith.constant dense<0xFF800000> : vector<8xf32>
    %130 = vector.multi_reduction <maximumf>, %129, %cst_39 [1] : vector<8x8xf32> to vector<8xf32>
    %131 = vector.shape_cast %130 : vector<8xf32> to vector<8x1xf32>
    %132 = vector.broadcast %131 : vector<8x1xf32> to vector<8x8xf32>
    %133 = arith.subf %129, %132 : vector<8x8xf32>
    %134 = math.exp %133 : vector<8x8xf32>
    %cst_40 = arith.constant dense<0.000000e+00> : vector<8xf32>
    %135 = vector.multi_reduction <add>, %134, %cst_40 [1] : vector<8x8xf32> to vector<8xf32>
    %136 = vector.shape_cast %135 : vector<8xf32> to vector<8x1xf32>
    %137 = tpu.reciprocal %136 : vector<8x1xf32> -> vector<8x1xf32>
    %138 = vector.broadcast %137 : vector<8x1xf32> to vector<8x8xf32>
    %139 = arith.mulf %134, %138 : vector<8x8xf32>
    %cst_41 = arith.constant dense<0.000000e+00> : vector<8x8xf32>
    %140 = tpu.matmul %139, %127, %cst_41 {dimension_numbers = #tpu.dot_dimension_numbers<[1], [0], [0], [1], [0, 0, 1, 1], [], []>} : vector<8x8xf32>, vector<8x8xf32>, vector<8x8xf32> -> vector<8x8xf32>
    %c8_42 = arith.constant 8 : index
    %c0_43 = arith.constant 0 : index
    %141 = vector.load %arg7[%c8_42, %c0_43] : memref<16x32xf32, #tpu.memory_space<vmem>>, vector<8x8xf32>
    tpu.vector_store %arg7[%c8_42, %c0_43], %140 {strides = array<i32>} : memref<16x32xf32, #tpu.memory_space<vmem>>, vector<8x8xf32>,
    %142 = arith.mulf %140, %140 : vector<8x8xf32>
    %cst_44 = arith.constant dense<0.000000e+00> : vector<8xf32>
    %143 = vector.multi_reduction <add>, %142, %cst_44 [1] : vector<8x8xf32> to vector<8xf32>
    %144 = vector.shape_cast %143 : vector<8xf32> to vector<8x1xf32>
    %145 = tpu.transpose %144, [1, 0] : vector<8x1xf32> -> vector<1x8xf32>
    %146 = math.sqrt %145 : vector<1x8xf32>
    %147 = vector.extract_strided_slice %139 {offsets = [0, 0], sizes = [1, 8], strides = [1, 1]} : vector<8x8xf32> to vector<1x8xf32>
    %148 = arith.mulf %147, %146 : vector<1x8xf32>
    %149 = arith.addf %123, %148 : vector<1x8xf32>
    %150 = arith.addf %124, %146 : vector<1x8xf32>
    %151 = vector.extract_strided_slice %5 {offsets = [8, 8], sizes = [8, 8], strides = [1, 1]} : vector<16x32xf32> to vector<8x8xf32>
    %152 = vector.extract_strided_slice %6 {offsets = [8, 8], sizes = [8, 8], strides = [1, 1]} : vector<16x32xf32> to vector<8x8xf32>
    %153 = vector.extract_strided_slice %7 {offsets = [8, 8], sizes = [8, 8], strides = [1, 1]} : vector<16x32xf32> to vector<8x8xf32>
    %154 = tpu.transpose %152, [1, 0] : vector<8x8xf32> -> vector<8x8xf32>
    %cst_45 = arith.constant dense<0.000000e+00> : vector<8x8xf32>
    %155 = tpu.matmul %151, %154, %cst_45 {dimension_numbers = #tpu.dot_dimension_numbers<[1], [0], [0], [1], [0, 0, 1, 1], [], []>} : vector<8x8xf32>, vector<8x8xf32>, vector<8x8xf32> -> vector<8x8xf32>
    %cst_46 = arith.constant dense<0xFF800000> : vector<8xf32>
    %156 = vector.multi_reduction <maximumf>, %155, %cst_46 [1] : vector<8x8xf32> to vector<8xf32>
    %157 = vector.shape_cast %156 : vector<8xf32> to vector<8x1xf32>
    %158 = vector.broadcast %157 : vector<8x1xf32> to vector<8x8xf32>
    %159 = arith.subf %155, %158 : vector<8x8xf32>
    %160 = math.exp %159 : vector<8x8xf32>
    %cst_47 = arith.constant dense<0.000000e+00> : vector<8xf32>
    %161 = vector.multi_reduction <add>, %160, %cst_47 [1] : vector<8x8xf32> to vector<8xf32>
    %162 = vector.shape_cast %161 : vector<8xf32> to vector<8x1xf32>
    %163 = tpu.reciprocal %162 : vector<8x1xf32> -> vector<8x1xf32>
    %164 = vector.broadcast %163 : vector<8x1xf32> to vector<8x8xf32>
    %165 = arith.mulf %160, %164 : vector<8x8xf32>
    %cst_48 = arith.constant dense<0.000000e+00> : vector<8x8xf32>
    %166 = tpu.matmul %165, %153, %cst_48 {dimension_numbers = #tpu.dot_dimension_numbers<[1], [0], [0], [1], [0, 0, 1, 1], [], []>} : vector<8x8xf32>, vector<8x8xf32>, vector<8x8xf32> -> vector<8x8xf32>
    %c8_49 = arith.constant 8 : index
    %c8_50 = arith.constant 8 : index
    %167 = vector.load %arg7[%c8_49, %c8_50] : memref<16x32xf32, #tpu.memory_space<vmem>>, vector<8x8xf32>
    tpu.vector_store %arg7[%c8_49, %c8_50], %166 {strides = array<i32>} : memref<16x32xf32, #tpu.memory_space<vmem>>, vector<8x8xf32>,
    %168 = arith.mulf %166, %166 : vector<8x8xf32>
    %cst_51 = arith.constant dense<0.000000e+00> : vector<8xf32>
    %169 = vector.multi_reduction <add>, %168, %cst_51 [1] : vector<8x8xf32> to vector<8xf32>
    %170 = vector.shape_cast %169 : vector<8xf32> to vector<8x1xf32>
    %171 = tpu.transpose %170, [1, 0] : vector<8x1xf32> -> vector<1x8xf32>
    %172 = math.sqrt %171 : vector<1x8xf32>
    %173 = vector.extract_strided_slice %165 {offsets = [0, 0], sizes = [1, 8], strides = [1, 1]} : vector<8x8xf32> to vector<1x8xf32>
    %174 = arith.mulf %173, %172 : vector<1x8xf32>
    %175 = arith.addf %149, %174 : vector<1x8xf32>
    %176 = arith.addf %150, %172 : vector<1x8xf32>
    %177 = vector.extract_strided_slice %5 {offsets = [8, 16], sizes = [8, 8], strides = [1, 1]} : vector<16x32xf32> to vector<8x8xf32>
    %178 = vector.extract_strided_slice %6 {offsets = [8, 16], sizes = [8, 8], strides = [1, 1]} : vector<16x32xf32> to vector<8x8xf32>
    %179 = vector.extract_strided_slice %7 {offsets = [8, 16], sizes = [8, 8], strides = [1, 1]} : vector<16x32xf32> to vector<8x8xf32>
    %180 = tpu.transpose %178, [1, 0] : vector<8x8xf32> -> vector<8x8xf32>
    %cst_52 = arith.constant dense<0.000000e+00> : vector<8x8xf32>
    %181 = tpu.matmul %177, %180, %cst_52 {dimension_numbers = #tpu.dot_dimension_numbers<[1], [0], [0], [1], [0, 0, 1, 1], [], []>} : vector<8x8xf32>, vector<8x8xf32>, vector<8x8xf32> -> vector<8x8xf32>
    %cst_53 = arith.constant dense<0xFF800000> : vector<8xf32>
    %182 = vector.multi_reduction <maximumf>, %181, %cst_53 [1] : vector<8x8xf32> to vector<8xf32>
    %183 = vector.shape_cast %182 : vector<8xf32> to vector<8x1xf32>
    %184 = vector.broadcast %183 : vector<8x1xf32> to vector<8x8xf32>
    %185 = arith.subf %181, %184 : vector<8x8xf32>
    %186 = math.exp %185 : vector<8x8xf32>
    %cst_54 = arith.constant dense<0.000000e+00> : vector<8xf32>
    %187 = vector.multi_reduction <add>, %186, %cst_54 [1] : vector<8x8xf32> to vector<8xf32>
    %188 = vector.shape_cast %187 : vector<8xf32> to vector<8x1xf32>
    %189 = tpu.reciprocal %188 : vector<8x1xf32> -> vector<8x1xf32>
    %190 = vector.broadcast %189 : vector<8x1xf32> to vector<8x8xf32>
    %191 = arith.mulf %186, %190 : vector<8x8xf32>
    %cst_55 = arith.constant dense<0.000000e+00> : vector<8x8xf32>
    %192 = tpu.matmul %191, %179, %cst_55 {dimension_numbers = #tpu.dot_dimension_numbers<[1], [0], [0], [1], [0, 0, 1, 1], [], []>} : vector<8x8xf32>, vector<8x8xf32>, vector<8x8xf32> -> vector<8x8xf32>
    %c8_56 = arith.constant 8 : index
    %c16_57 = arith.constant 16 : index
    %193 = vector.load %arg7[%c8_56, %c16_57] : memref<16x32xf32, #tpu.memory_space<vmem>>, vector<8x8xf32>
    tpu.vector_store %arg7[%c8_56, %c16_57], %192 {strides = array<i32>} : memref<16x32xf32, #tpu.memory_space<vmem>>, vector<8x8xf32>,
    %194 = arith.mulf %192, %192 : vector<8x8xf32>
    %cst_58 = arith.constant dense<0.000000e+00> : vector<8xf32>
    %195 = vector.multi_reduction <add>, %194, %cst_58 [1] : vector<8x8xf32> to vector<8xf32>
    %196 = vector.shape_cast %195 : vector<8xf32> to vector<8x1xf32>
    %197 = tpu.transpose %196, [1, 0] : vector<8x1xf32> -> vector<1x8xf32>
    %198 = math.sqrt %197 : vector<1x8xf32>
    %199 = vector.extract_strided_slice %191 {offsets = [0, 0], sizes = [1, 8], strides = [1, 1]} : vector<8x8xf32> to vector<1x8xf32>
    %200 = arith.mulf %199, %198 : vector<1x8xf32>
    %201 = arith.addf %175, %200 : vector<1x8xf32>
    %202 = arith.addf %176, %198 : vector<1x8xf32>
    %203 = vector.extract_strided_slice %5 {offsets = [8, 24], sizes = [8, 8], strides = [1, 1]} : vector<16x32xf32> to vector<8x8xf32>
    %204 = vector.extract_strided_slice %6 {offsets = [8, 24], sizes = [8, 8], strides = [1, 1]} : vector<16x32xf32> to vector<8x8xf32>
    %205 = vector.extract_strided_slice %7 {offsets = [8, 24], sizes = [8, 8], strides = [1, 1]} : vector<16x32xf32> to vector<8x8xf32>
    %206 = tpu.transpose %204, [1, 0] : vector<8x8xf32> -> vector<8x8xf32>
    %cst_59 = arith.constant dense<0.000000e+00> : vector<8x8xf32>
    %207 = tpu.matmul %203, %206, %cst_59 {dimension_numbers = #tpu.dot_dimension_numbers<[1], [0], [0], [1], [0, 0, 1, 1], [], []>} : vector<8x8xf32>, vector<8x8xf32>, vector<8x8xf32> -> vector<8x8xf32>
    %cst_60 = arith.constant dense<0xFF800000> : vector<8xf32>
    %208 = vector.multi_reduction <maximumf>, %207, %cst_60 [1] : vector<8x8xf32> to vector<8xf32>
    %209 = vector.shape_cast %208 : vector<8xf32> to vector<8x1xf32>
    %210 = vector.broadcast %209 : vector<8x1xf32> to vector<8x8xf32>
    %211 = arith.subf %207, %210 : vector<8x8xf32>
    %212 = math.exp %211 : vector<8x8xf32>
    %cst_61 = arith.constant dense<0.000000e+00> : vector<8xf32>
    %213 = vector.multi_reduction <add>, %212, %cst_61 [1] : vector<8x8xf32> to vector<8xf32>
    %214 = vector.shape_cast %213 : vector<8xf32> to vector<8x1xf32>
    %215 = tpu.reciprocal %214 : vector<8x1xf32> -> vector<8x1xf32>
    %216 = vector.broadcast %215 : vector<8x1xf32> to vector<8x8xf32>
    %217 = arith.mulf %212, %216 : vector<8x8xf32>
    %cst_62 = arith.constant dense<0.000000e+00> : vector<8x8xf32>
    %218 = tpu.matmul %217, %205, %cst_62 {dimension_numbers = #tpu.dot_dimension_numbers<[1], [0], [0], [1], [0, 0, 1, 1], [], []>} : vector<8x8xf32>, vector<8x8xf32>, vector<8x8xf32> -> vector<8x8xf32>
    %c8_63 = arith.constant 8 : index
    %c24_64 = arith.constant 24 : index
    %219 = vector.load %arg7[%c8_63, %c24_64] : memref<16x32xf32, #tpu.memory_space<vmem>>, vector<8x8xf32>
    tpu.vector_store %arg7[%c8_63, %c24_64], %218 {strides = array<i32>} : memref<16x32xf32, #tpu.memory_space<vmem>>, vector<8x8xf32>,
    %220 = arith.mulf %218, %218 : vector<8x8xf32>
    %cst_65 = arith.constant dense<0.000000e+00> : vector<8xf32>
    %221 = vector.multi_reduction <add>, %220, %cst_65 [1] : vector<8x8xf32> to vector<8xf32>
    %222 = vector.shape_cast %221 : vector<8xf32> to vector<8x1xf32>
    %223 = tpu.transpose %222, [1, 0] : vector<8x1xf32> -> vector<1x8xf32>
    %224 = math.sqrt %223 : vector<1x8xf32>
    %225 = vector.extract_strided_slice %217 {offsets = [0, 0], sizes = [1, 8], strides = [1, 1]} : vector<8x8xf32> to vector<1x8xf32>
    %226 = arith.mulf %225, %224 : vector<1x8xf32>
    %227 = arith.addf %201, %226 : vector<1x8xf32>
    %228 = arith.addf %202, %224 : vector<1x8xf32>
    %cst_66 = arith.constant 9.99999993E-9 : f32
    %229 = vector.broadcast %cst_66 : f32 to vector<1x8xf32>
    %230 = arith.addf %228, %229 : vector<1x8xf32>
    %231 = tpu.reciprocal %230 : vector<1x8xf32> -> vector<1x8xf32>
    %232 = arith.mulf %227, %231 : vector<1x8xf32>
    %233 = tpu.concatenate %232, %8 in 1 : vector<1x8xf32>, vector<1x120xf32> -> vector<1x128xf32>
    %c1 = arith.constant 1 : index
    %c0_67 = arith.constant 0 : index
    %c0_68 = arith.constant 0 : index
    %234 = vector.load %arg6[%c1, %c0_67, %c0_68] : memref<2x1x128xf32, #tpu.memory_space<vmem>>, vector<1x1x128xf32>
    %235 = vector.shape_cast %234 : vector<1x1x128xf32> to vector<1x128xf32>
    %236 = vector.shape_cast %233 : vector<1x128xf32> to vector<1x1x128xf32>
    tpu.vector_store %arg6[%c1, %c0_67, %c0_68], %236 {strides = array<i32>} : memref<2x1x128xf32, #tpu.memory_space<vmem>>, vector<1x1x128xf32>,
    %c0_69 = arith.constant 0 : index
    %c0_70 = arith.constant 0 : index
    %237 = vector.load %arg7[%c0_69, %c0_70] : memref<16x32xf32, #tpu.memory_space<vmem>>, vector<16x32xf32>
    %c0_71 = arith.constant 0 : index
    %c0_72 = arith.constant 0 : index
    %238 = vector.load %arg3[%c0_71, %c0_72] : memref<32x32xf32, #tpu.memory_space<vmem>>, vector<32x32xf32>
    %cst_73 = arith.constant dense<0.000000e+00> : vector<16x32xf32>
    %239 = tpu.matmul %237, %238, %cst_73 {dimension_numbers = #tpu.dot_dimension_numbers<[1], [0], [0], [1], [0, 0, 1, 1], [], []>} : vector<16x32xf32>, vector<32x32xf32>, vector<16x32xf32> -> vector<16x32xf32>
    %c0_74 = arith.constant 0 : index
    %c0_75 = arith.constant 0 : index
    %240 = vector.load %arg4[%c0_74, %c0_75] : memref<1x32xf32, #tpu.memory_space<vmem>>, vector<1x32xf32>
    %241 = vector.broadcast %240 : vector<1x32xf32> to vector<16x32xf32>
    %242 = arith.addf %239, %241 : vector<16x32xf32>
    %c0_76 = arith.constant 0 : index
    %c0_77 = arith.constant 0 : index
    %243 = vector.load %arg5[%c0_76, %c0_77] : memref<16x32xf32, #tpu.memory_space<vmem>>, vector<16x32xf32>
    tpu.vector_store %arg5[%c0_76, %c0_77], %242 {strides = array<i32>} : memref<16x32xf32, #tpu.memory_space<vmem>>, vector<16x32xf32>,
    return
  }
  func.func @transform_0(%arg0: i32) -> (i32, i32) {
    %c0_i32 = arith.constant 0 : i32
    %c0_i32_0 = arith.constant 0 : i32
    return %arg0, %c0_i32 : i32, i32
  }
  func.func @transform_1(%arg0: i32) -> (i32, i32) {
    %c0_i32 = arith.constant 0 : i32
    %c0_i32_0 = arith.constant 0 : i32
    %c0_i32_1 = arith.constant 0 : i32
    return %c0_i32, %c0_i32_0 : i32, i32
  }
  func.func @transform_2(%arg0: i32) -> (i32, i32) {
    %c0_i32 = arith.constant 0 : i32
    %c0_i32_0 = arith.constant 0 : i32
    %c0_i32_1 = arith.constant 0 : i32
    return %c0_i32, %c0_i32_0 : i32, i32
  }
  func.func @transform_3(%arg0: i32) -> (i32, i32) {
    %c0_i32 = arith.constant 0 : i32
    %c0_i32_0 = arith.constant 0 : i32
    %c0_i32_1 = arith.constant 0 : i32
    return %c0_i32, %c0_i32_0 : i32, i32
  }
  func.func @transform_4(%arg0: i32) -> (i32, i32) {
    %c0_i32 = arith.constant 0 : i32
    %c0_i32_0 = arith.constant 0 : i32
    return %arg0, %c0_i32 : i32, i32
  }
  func.func @transform_5(%arg0: i32) -> (i32, i32, i32) {
    %c0_i32 = arith.constant 0 : i32
    %c0_i32_0 = arith.constant 0 : i32
    %c0_i32_1 = arith.constant 0 : i32
    return %arg0, %c0_i32, %c0_i32_0 : i32, i32, i32
  }
}

</mosaic_0001>

<llo_original>
// kernel: tpu_custom_call.1
$region0: #{tpu_custom_call.1}
  #allocation0 [shape = 'u32[]', space=smem, size = 0x4, offset = 0x4, fixed_abs, tag = 'smem constant byte address 0x4 - core index']
  #allocation1 [shape = 'u32[72,128]{1,0:T(1,128)}', space=vmem, size = 0x9000, scoped, tag = 'internal scratch']
  #allocation2 [shape = 'f32[16,32]{1,0:T(8,128)}', space=vmem, size = 0x2000, scoped, tag = 'scratch operand']
  %s0 = inlined_call_operand.hbm [shape: f32[16,32], index: 0, kind: input, shape index: {}]
  %s1 = inlined_call_operand.hbm [shape: f32[32,96], index: 1, kind: input, shape index: {}]
  %s2 = inlined_call_operand.hbm [shape: f32[32,32], index: 2, kind: input, shape index: {}]
  %s3 = inlined_call_operand.vmem [shape: f32[1,32], index: 3, kind: input, shape index: {}]
  %s4 = inlined_call_operand.hbm [shape: f32[16,32], index: 4, kind: output, shape index: {0}]
  %s5 = inlined_call_operand.hbm [shape: f32[2,1,128], index: 5, kind: output, shape index: {1}]
  %6 = xla_tuple %s4, %s5
  %s7 = sld [smem:[#allocation0]]
  $region46: #{tpu_custom_call.1} parent=0
    _
  %s9 = ssub.s32 1, %s7
  %s10 = scalar_select 0, %s9, %s7
  $region1: #{tpu_custom_call.1} parent=0
    #allocation3 [shape = 'u8[8192]{0}', space=vmem, size = 0x2000, scoped, tag = 'input window, operand 0, single buffered']
    #allocation4 [shape = 's32[1]{0}', space=sflag, size = 0x4, scoped, tag = 'scoped memory for tpu_custom_call.1']
    #allocation5 [shape = 's32[1]{0}', space=sflag, size = 0x4, scoped, tag = 'scoped memory for tpu_custom_call.1']
    #allocation6 [shape = 'u8[16384]{0}', space=vmem, size = 0x4000, scoped, tag = 'input window, operand 1, single buffered']
    #allocation7 [shape = 's32[1]{0}', space=sflag, size = 0x4, scoped, tag = 'scoped memory for tpu_custom_call.1']
    #allocation8 [shape = 'u8[16384]{0}', space=vmem, size = 0x4000, scoped, tag = 'input window, operand 2, single buffered']
    #allocation9 [shape = 'u8[8192]{0}', space=vmem, size = 0x2000, scoped, tag = 'output window, operand 0, single buffered']
    #allocation10 [shape = 'u8[1024]{0}', space=vmem, size = 0x400, scoped, tag = 'output window, operand 1, single buffered']
    #allocation11 [shape = 's32[1]{0}', space=sflag, size = 0x4, scoped, tag = 'scoped memory for tpu_custom_call.1']
    %11 = vsyncpa [#allocation4], 0
    %12 = vsyncpa [#allocation7], 0
    %13 = vsyncpa [#allocation5], 0
    %14 = vsyncpa [#allocation11], 0
    // Predicated region
    $region2: #{tpu_custom_call.1} parent=1 // pred_check
      _
    $region3: #{tpu_custom_call.1} parent=1 // pred_check_branch
      %16 = sbr.rel (0) target = $region5
    $region4: #{tpu_custom_call.1} parent=1 // pred_region
      %18 = vsyncadd [#allocation4], 0
      %s19 = sshll.u32 %s0, 4
      %s20 = int_to_ptr.hbm [resolvable:$true] %s19
      %s21 = sshll.u32 [#allocation3], 4
      %s22 = int_to_ptr.vmem [resolvable:$true] %s21
      %27 = dma.hbm_to_vmem [thread:$0]  %s20, 256, %s22, [#allocation4], 128, 128, 8
    $region5: #{tpu_custom_call.1} parent=1 // pred_fallthru
      _
    // Predicated region
    $region6: #{tpu_custom_call.1} parent=1 // pred_check
      _
    $region7: #{tpu_custom_call.1} parent=1 // pred_check_branch
      %29 = sbr.rel (0) target = $region9
    $region8: #{tpu_custom_call.1} parent=1 // pred_region
      %31 = vsyncadd [#allocation7], 0
      %s32 = sshll.u32 %s1, 4
      %s33 = int_to_ptr.hbm [resolvable:$true] %s32
      %s34 = sshll.u32 [#allocation6], 4
      %s35 = int_to_ptr.vmem [resolvable:$true] %s34
      %40 = dma.hbm_to_vmem [thread:$0]  %s33, 512, %s35, [#allocation7], 128, 128, 8
    $region9: #{tpu_custom_call.1} parent=1 // pred_fallthru
      _
    // Predicated region
    $region10: #{tpu_custom_call.1} parent=1 // pred_check
      _
    $region11: #{tpu_custom_call.1} parent=1 // pred_check_branch
      %42 = sbr.rel (0) target = $region13
    $region12: #{tpu_custom_call.1} parent=1 // pred_region
      %44 = vsyncadd [#allocation7], 0
      %s45 = sshll.u32 %s2, 4
      %s46 = int_to_ptr.hbm [resolvable:$true] %s45
      %s47 = sshll.u32 [#allocation8], 4
      %s48 = int_to_ptr.vmem [resolvable:$true] %s47
      %53 = dma.hbm_to_vmem [thread:$0]  %s46, 512, %s48, [#allocation7], 128, 128, 8
    $region13: #{tpu_custom_call.1} parent=1 // pred_fallthru
      _
    // Predicated region
    $region14: #{tpu_custom_call.1} parent=1 // pred_check
      _
    $region15: #{tpu_custom_call.1} parent=1 // pred_check_branch
      %55 = sbr.rel (0) target = $region17
    $region16: #{tpu_custom_call.1} parent=1 // pred_region
      _
    $region17: #{tpu_custom_call.1} parent=1 // pred_fallthru
      _
    // Predicated region
    $region18: #{tpu_custom_call.1} parent=1 // pred_check
      _
    $region19: #{tpu_custom_call.1} parent=1 // pred_check_branch
      %57 = sbr.rel (0) target = $region21
    $region20: #{tpu_custom_call.1} parent=1 // pred_region
      %59 = dma.done [#allocation4], 256
    $region21: #{tpu_custom_call.1} parent=1 // pred_fallthru
      _
    // Predicated region
    $region22: #{tpu_custom_call.1} parent=1 // pred_check
      _
    $region23: #{tpu_custom_call.1} parent=1 // pred_check_branch
      %61 = sbr.rel (0) target = $region25
    $region24: #{tpu_custom_call.1} parent=1 // pred_region
      %63 = dma.done [#allocation7], 512
    $region25: #{tpu_custom_call.1} parent=1 // pred_fallthru
      _
    // Predicated region
    $region26: #{tpu_custom_call.1} parent=1 // pred_check
      _
    $region27: #{tpu_custom_call.1} parent=1 // pred_check_branch
      %65 = sbr.rel (0) target = $region29
    $region28: #{tpu_custom_call.1} parent=1 // pred_region
      %67 = dma.done [#allocation7], 512
    $region29: #{tpu_custom_call.1} parent=1 // pred_fallthru
      _
    %v68 = vld [vmem:[#allocation3] sm:$0xff]
    %v69 = vld [vmem:[#allocation3 + $0x8] sm:$0xff]
    %v70 = vld [vmem:[#allocation6] sm:$0xff]
    %v71 = vld [vmem:[#allocation6 + $0x8] sm:$0xff]
    %v72 = vld [vmem:[#allocation6 + $0x10] sm:$0xff]
    %v73 = vld [vmem:[#allocation6 + $0x18] sm:$0xff]
    %vm74 = vcmask 261120
    %v76 = vsel %vm74, %v68, 0
    %v79 = vsel %vm74, %v69, 0
    %81 = vmatpush.msra.mxu0 0.0
    %82 = vmatpush.msra.mxu0 0.0
    %83 = vmatpush.msra.mxu0 0.0
    %84 = vmatpush.msra.mxu0 0.0
    %85 = vmatpush.msra.mxu0 0.0
    %86 = vmatpush.msra.mxu0 0.0
    %87 = vmatpush.msra.mxu0 0.0
    %88 = vmatpush.msra.mxu0 0.0
    %89 = vmatpush.msra.mxu0 0.0
    %90 = vmatpush.msra.mxu0 0.0
    %91 = vmatpush.msra.mxu0 0.0
    %92 = vmatpush.msra.mxu0 0.0
    %93 = vmatpush.msra.mxu0 %v73
    %94 = vmatpush.msra.mxu0 %v72
    %95 = vmatpush.msra.mxu0 %v71
    %96 = vmatpush.msra.mxu0 %v70
    %97 = vmatmul.f32.gmra.mxu0 %v76
    %v98 = vpop.f32.mrf.mxu0
    %v99 = vadd.f32 0.0, %v98
    %100 = vmatmul.f32.gmra.mxu0 %v79
    %v101 = vpop.f32.mrf.mxu0
    %v102 = vadd.f32 0.0, %v101
    %103 = vdwg.mxu0
    %v104 = vmul.f32 %v99, 0.35355338
    %v105 = vmul.f32 %v102, 0.35355338
    %107 = vrot.lane.b32.xlu0 %v99, 96
    %v108 = vpop.permute.xlu0 %107
    %vm109 = vcmask 64512
    %v111 = vsel %vm109, %v104, 0
    %v113 = vsel %vm109, %v108, 0
    %115 = vmatpush.xpose.msra.mxu0 0.0
    %116 = vmatpush.xpose.msra.mxu0 0.0
    %117 = vmatpush.xpose.msra.mxu0 0.0
    %118 = vmatpush.xpose.msra.mxu0 0.0
    %119 = vmatpush.xpose.msra.mxu0 0.0
    %120 = vmatpush.xpose.msra.mxu0 0.0
    %121 = vmatpush.xpose.msra.mxu0 0.0
    %122 = vmatpush.xpose.msra.mxu0 0.0
    %123 = vmatpush.xpose.msra.mxu0 0.0
    %124 = vmatpush.xpose.msra.mxu0 0.0
    %125 = vmatpush.xpose.msra.mxu0 0.0
    %126 = vmatpush.xpose.msra.mxu0 0.0
    %127 = vmatpush.xpose.msra.mxu0 0.0
    %128 = vmatpush.xpose.msra.mxu0 0.0
    %129 = vmatpush.xpose.msra.mxu0 0.0
    %130 = vmatpush.xpose.msra.mxu0 %v113
    %131 = vmatmul.f32.gmra.mxu0 %v111
    %v132 = vpop.f32.mrf.mxu0
    %v133 = vadd.f32 0.0, %v132
    %134 = vdwg.mxu0
    %v135 = vsel %vm109, %v133, -inf
    %136 = vmax.xlane.f32.xlu0 %v135
    %v137 = vpop.xlane.xlu0 %136
    %v138 = vsub.f32 %v133, %v137
    %v139 = vmul.f32 %v138, 1.442695
    %v140 = vpow.pop %v139
    %v141 = vsel %vm109, %v140, 0.0
    %142 = vadd.xlane.f32.xlu0 %v141
    %v143 = vpop.xlane.xlu0 %142
    %v144 = vrcp.pop %v143
    %v145 = vmul.f32 %v143, %v144
    %v146 = vsub.f32 1.0, %v145
    %v147 = vmul.f32 %v144, %v146
    %v148 = vadd.f32 %v144, %v147
    %vm149 = vweird.f32 %v143
    %vm150 = vweird.f32 %v144
    %vm151 = vmor %vm149, %vm150
    %v152 = vsel %vm151, %v144, %v148
    %v153 = vand.u32 2147483647, %v143
    %vm154 = vcmp.eq.f32.partialorder %v153, 8.507059e+37
    %v155 = vand.u32 %v143, 2147483648
    %v156 = vor.u32 1.1754944e-38, %v155
    %v157 = vsel %vm154, %v156, %v152
    %v158 = vmul.f32 %v140, %v157
    %159 = vrot.lane.b32.xlu0 %v99, 64
    %v160 = vpop.permute.xlu0 %159
    %v163 = vsel %vm109, %v158, 0
    %165 = vmatpush.msra.mxu0 0.0
    %166 = vmatpush.msra.mxu0 0.0
    %167 = vmatpush.msra.mxu0 0.0
    %168 = vmatpush.msra.mxu0 0.0
    %169 = vmatpush.msra.mxu0 0.0
    %170 = vmatpush.msra.mxu0 0.0
    %171 = vmatpush.msra.mxu0 0.0
    %172 = vmatpush.msra.mxu0 0.0
    %173 = vmatpush.msra.mxu0 0.0
    %174 = vmatpush.msra.mxu0 0.0
    %175 = vmatpush.msra.mxu0 0.0
    %176 = vmatpush.msra.mxu0 0.0
    %177 = vmatpush.msra.mxu0 0.0
    %178 = vmatpush.msra.mxu0 0.0
    %179 = vmatpush.msra.mxu0 0.0
    %180 = vmatpush.msra.mxu0 %v160
    %181 = vmatmul.f32.gmra.mxu0 %v163
    %v182 = vpop.f32.mrf.mxu0
    %v183 = vadd.f32 0.0, %v182
    %184 = vdwg.mxu0
    %185 = vst.msk [vmem:[#allocation2] sm:$0xff] %vm109, %v183
    %v186 = vmul.f32 %v183, %v183
    %v187 = vsel %vm109, %v186, 0.0
    %188 = vadd.xlane.f32.xlu0 %v187
    %v189 = vpop.xlane.xlu0 %188
    %190 = vxpose.xlu0.b32.start [1/16] %v189, 128
    %191 = vxpose.xlu0.b32.cont [2/16] 0.0, 128
    %192 = vxpose.xlu0.b32.cont [3/16] 0.0, 128
    %193 = vxpose.xlu0.b32.cont [4/16] 0.0, 128
    %194 = vxpose.xlu0.b32.cont [5/16] 0.0, 128
    %195 = vxpose.xlu0.b32.cont [6/16] 0.0, 128
    %196 = vxpose.xlu0.b32.cont [7/16] 0.0, 128
    %197 = vxpose.xlu0.b32.cont [8/16] 0.0, 128
    %198 = vxpose.xlu0.b32.cont [9/16] 0.0, 128
    %199 = vxpose.xlu0.b32.cont [10/16] 0.0, 128
    %200 = vxpose.xlu0.b32.cont [11/16] 0.0, 128
    %201 = vxpose.xlu0.b32.cont [12/16] 0.0, 128
    %202 = vxpose.xlu0.b32.cont [13/16] 0.0, 128
    %203 = vxpose.xlu0.b32.cont [14/16] 0.0, 128
    %204 = vxpose.xlu0.b32.cont [15/16] 0.0, 128
    %205 = vxpose.xlu0.b32.end [16/16] 0.0, 128
    %v206 = vpop.trf.xlu0
    %v207 = vpop.trf.xlu0
    %v208 = vpop.trf.xlu0
    %v209 = vpop.trf.xlu0
    %v210 = vpop.trf.xlu0
    %v211 = vpop.trf.xlu0
    %v212 = vpop.trf.xlu0
    %v213 = vpop.trf.xlu0
    %v214 = vpop.trf.xlu0
    %v215 = vpop.trf.xlu0
    %v216 = vpop.trf.xlu0
    %v217 = vpop.trf.xlu0
    %v218 = vpop.trf.xlu0
    %v219 = vpop.trf.xlu0
    %v220 = vpop.trf.xlu0
    %v221 = vpop.trf.xlu0
    %v222 = vrsqrt.pop %v206
    %v223 = vmul.f32 %v222, %v206
    %v224 = vmul.f32 %v223, %v222
    %v225 = vmul.f32 0.5, %v224
    %v226 = vsub.f32 1.5, %v225
    %v227 = vmul.f32 %v222, %v226
    %v228 = vmul.f32 %v206, %v227
    %vm229 = vcmp.eq.f32.partialorder %v206, inf
    %v230 = vsel %vm229, %v206, %v228
    %vm231 = vcmp.eq.f32.partialorder %v206, 0.0
    %v232 = vand.u32 %v206, 2147483648
    %v233 = vsel %vm231, %v232, %v230
    %v234 = vmul.f32 %v158, %v233
    %v235 = vadd.f32 %v234, 0.0
    %v236 = vadd.f32 %v233, 0.0
    %237 = vrot.lane.b32.xlu0 %v104, 120
    %v238 = vpop.permute.xlu0 %237
    %239 = vrot.lane.b32.xlu0 %v99, 88
    %v240 = vpop.permute.xlu0 %239
    %v241 = vsel %vm109, %v238, 0
    %v243 = vsel %vm109, %v240, 0
    %245 = vmatpush.xpose.msra.mxu0 0.0
    %246 = vmatpush.xpose.msra.mxu0 0.0
    %247 = vmatpush.xpose.msra.mxu0 0.0
    %248 = vmatpush.xpose.msra.mxu0 0.0
    %249 = vmatpush.xpose.msra.mxu0 0.0
    %250 = vmatpush.xpose.msra.mxu0 0.0
    %251 = vmatpush.xpose.msra.mxu0 0.0
    %252 = vmatpush.xpose.msra.mxu0 0.0
    %253 = vmatpush.xpose.msra.mxu0 0.0
    %254 = vmatpush.xpose.msra.mxu0 0.0
    %255 = vmatpush.xpose.msra.mxu0 0.0
    %256 = vmatpush.xpose.msra.mxu0 0.0
    %257 = vmatpush.xpose.msra.mxu0 0.0
    %258 = vmatpush.xpose.msra.mxu0 0.0
    %259 = vmatpush.xpose.msra.mxu0 0.0
    %260 = vmatpush.xpose.msra.mxu0 %v243
    %261 = vmatmul.f32.gmra.mxu0 %v241
    %v262 = vpop.f32.mrf.mxu0
    %v263 = vadd.f32 0.0, %v262
    %264 = vdwg.mxu0
    %v265 = vsel %vm109, %v263, -inf
    %266 = vmax.xlane.f32.xlu0 %v265
    %v267 = vpop.xlane.xlu0 %266
    %v268 = vsub.f32 %v263, %v267
    %v269 = vmul.f32 %v268, 1.442695
    %v270 = vpow.pop %v269
    %v271 = vsel %vm109, %v270, 0.0
    %272 = vadd.xlane.f32.xlu0 %v271
    %v273 = vpop.xlane.xlu0 %272
    %v274 = vrcp.pop %v273
    %v275 = vmul.f32 %v273, %v274
    %v276 = vsub.f32 1.0, %v275
    %v277 = vmul.f32 %v274, %v276
    %v278 = vadd.f32 %v274, %v277
    %vm279 = vweird.f32 %v273
    %vm280 = vweird.f32 %v274
    %vm281 = vmor %vm279, %vm280
    %v282 = vsel %vm281, %v274, %v278
    %v283 = vand.u32 2147483647, %v273
    %vm284 = vcmp.eq.f32.partialorder %v283, 8.507059e+37
    %v285 = vand.u32 %v273, 2147483648
    %v286 = vor.u32 1.1754944e-38, %v285
    %v287 = vsel %vm284, %v286, %v282
    %v288 = vmul.f32 %v270, %v287
    %289 = vrot.lane.b32.xlu0 %v99, 56
    %v290 = vpop.permute.xlu0 %289
    %v293 = vsel %vm109, %v288, 0
    %295 = vmatpush.msra.mxu0 0.0
    %296 = vmatpush.msra.mxu0 0.0
    %297 = vmatpush.msra.mxu0 0.0
    %298 = vmatpush.msra.mxu0 0.0
    %299 = vmatpush.msra.mxu0 0.0
    %300 = vmatpush.msra.mxu0 0.0
    %301 = vmatpush.msra.mxu0 0.0
    %302 = vmatpush.msra.mxu0 0.0
    %303 = vmatpush.msra.mxu0 0.0
    %304 = vmatpush.msra.mxu0 0.0
    %305 = vmatpush.msra.mxu0 0.0
    %306 = vmatpush.msra.mxu0 0.0
    %307 = vmatpush.msra.mxu0 0.0
    %308 = vmatpush.msra.mxu0 0.0
    %309 = vmatpush.msra.mxu0 0.0
    %310 = vmatpush.msra.mxu0 %v290
    %311 = vmatmul.f32.gmra.mxu0 %v293
    %v312 = vpop.f32.mrf.mxu0
    %v313 = vadd.f32 0.0, %v312
    %314 = vdwg.mxu0
    %316 = vrot.lane.b32.xlu0 %v313, 8
    %v317 = vpop.permute.xlu0 %316
    %vm319 = vcmask 130112
    %320 = vst.msk [vmem:[#allocation2] sm:$0xff] %vm319, %v317
    %v321 = vmul.f32 %v313, %v313
    %v322 = vsel %vm109, %v321, 0.0
    %323 = vadd.xlane.f32.xlu0 %v322
    %v324 = vpop.xlane.xlu0 %323
    %325 = vxpose.xlu0.b32.start [1/16] %v324, 128
    %326 = vxpose.xlu0.b32.cont [2/16] 0.0, 128
    %327 = vxpose.xlu0.b32.cont [3/16] 0.0, 128
    %328 = vxpose.xlu0.b32.cont [4/16] 0.0, 128
    %329 = vxpose.xlu0.b32.cont [5/16] 0.0, 128
    %330 = vxpose.xlu0.b32.cont [6/16] 0.0, 128
    %331 = vxpose.xlu0.b32.cont [7/16] 0.0, 128
    %332 = vxpose.xlu0.b32.cont [8/16] 0.0, 128
    %333 = vxpose.xlu0.b32.cont [9/16] 0.0, 128
    %334 = vxpose.xlu0.b32.cont [10/16] 0.0, 128
    %335 = vxpose.xlu0.b32.cont [11/16] 0.0, 128
    %336 = vxpose.xlu0.b32.cont [12/16] 0.0, 128
    %337 = vxpose.xlu0.b32.cont [13/16] 0.0, 128
    %338 = vxpose.xlu0.b32.cont [14/16] 0.0, 128
    %339 = vxpose.xlu0.b32.cont [15/16] 0.0, 128
    %340 = vxpose.xlu0.b32.end [16/16] 0.0, 128
    %v341 = vpop.trf.xlu0
    %v342 = vpop.trf.xlu0
    %v343 = vpop.trf.xlu0
    %v344 = vpop.trf.xlu0
    %v345 = vpop.trf.xlu0
    %v346 = vpop.trf.xlu0
    %v347 = vpop.trf.xlu0
    %v348 = vpop.trf.xlu0
    %v349 = vpop.trf.xlu0
    %v350 = vpop.trf.xlu0
    %v351 = vpop.trf.xlu0
    %v352 = vpop.trf.xlu0
    %v353 = vpop.trf.xlu0
    %v354 = vpop.trf.xlu0
    %v355 = vpop.trf.xlu0
    %v356 = vpop.trf.xlu0
    %v357 = vrsqrt.pop %v341
    %v358 = vmul.f32 %v357, %v341
    %v359 = vmul.f32 %v358, %v357
    %v360 = vmul.f32 0.5, %v359
    %v361 = vsub.f32 1.5, %v360
    %v362 = vmul.f32 %v357, %v361
    %v363 = vmul.f32 %v341, %v362
    %vm364 = vcmp.eq.f32.partialorder %v341, inf
    %v365 = vsel %vm364, %v341, %v363
    %vm366 = vcmp.eq.f32.partialorder %v341, 0.0
    %v367 = vand.u32 %v341, 2147483648
    %v368 = vsel %vm366, %v367, %v365
    %v369 = vmul.f32 %v288, %v368
    %v370 = vadd.f32 %v235, %v369
    %v371 = vadd.f32 %v236, %v368
    %372 = vrot.lane.b32.xlu0 %v104, 112
    %v373 = vpop.permute.xlu0 %372
    %374 = vrot.lane.b32.xlu0 %v99, 80
    %v375 = vpop.permute.xlu0 %374
    %v376 = vsel %vm109, %v373, 0
    %v378 = vsel %vm109, %v375, 0
    %380 = vmatpush.xpose.msra.mxu0 0.0
    %381 = vmatpush.xpose.msra.mxu0 0.0
    %382 = vmatpush.xpose.msra.mxu0 0.0
    %383 = vmatpush.xpose.msra.mxu0 0.0
    %384 = vmatpush.xpose.msra.mxu0 0.0
    %385 = vmatpush.xpose.msra.mxu0 0.0
    %386 = vmatpush.xpose.msra.mxu0 0.0
    %387 = vmatpush.xpose.msra.mxu0 0.0
    %388 = vmatpush.xpose.msra.mxu0 0.0
    %389 = vmatpush.xpose.msra.mxu0 0.0
    %390 = vmatpush.xpose.msra.mxu0 0.0
    %391 = vmatpush.xpose.msra.mxu0 0.0
    %392 = vmatpush.xpose.msra.mxu0 0.0
    %393 = vmatpush.xpose.msra.mxu0 0.0
    %394 = vmatpush.xpose.msra.mxu0 0.0
    %395 = vmatpush.xpose.msra.mxu0 %v378
    %396 = vmatmul.f32.gmra.mxu0 %v376
    %v397 = vpop.f32.mrf.mxu0
    %v398 = vadd.f32 0.0, %v397
    %399 = vdwg.mxu0
    %v400 = vsel %vm109, %v398, -inf
    %401 = vmax.xlane.f32.xlu0 %v400
    %v402 = vpop.xlane.xlu0 %401
    %v403 = vsub.f32 %v398, %v402
    %v404 = vmul.f32 %v403, 1.442695
    %v405 = vpow.pop %v404
    %v406 = vsel %vm109, %v405, 0.0
    %407 = vadd.xlane.f32.xlu0 %v406
    %v408 = vpop.xlane.xlu0 %407
    %v409 = vrcp.pop %v408
    %v410 = vmul.f32 %v408, %v409
    %v411 = vsub.f32 1.0, %v410
    %v412 = vmul.f32 %v409, %v411
    %v413 = vadd.f32 %v409, %v412
    %vm414 = vweird.f32 %v408
    %vm415 = vweird.f32 %v409
    %vm416 = vmor %vm414, %vm415
    %v417 = vsel %vm416, %v409, %v413
    %v418 = vand.u32 2147483647, %v408
    %vm419 = vcmp.eq.f32.partialorder %v418, 8.507059e+37
    %v420 = vand.u32 %v408, 2147483648
    %v421 = vor.u32 1.1754944e-38, %v420
    %v422 = vsel %vm419, %v421, %v417
    %v423 = vmul.f32 %v405, %v422
    %424 = vrot.lane.b32.xlu0 %v99, 48
    %v425 = vpop.permute.xlu0 %424
    %v428 = vsel %vm109, %v423, 0
    %430 = vmatpush.msra.mxu0 0.0
    %431 = vmatpush.msra.mxu0 0.0
    %432 = vmatpush.msra.mxu0 0.0
    %433 = vmatpush.msra.mxu0 0.0
    %434 = vmatpush.msra.mxu0 0.0
    %435 = vmatpush.msra.mxu0 0.0
    %436 = vmatpush.msra.mxu0 0.0
    %437 = vmatpush.msra.mxu0 0.0
    %438 = vmatpush.msra.mxu0 0.0
    %439 = vmatpush.msra.mxu0 0.0
    %440 = vmatpush.msra.mxu0 0.0
    %441 = vmatpush.msra.mxu0 0.0
    %442 = vmatpush.msra.mxu0 0.0
    %443 = vmatpush.msra.mxu0 0.0
    %444 = vmatpush.msra.mxu0 0.0
    %445 = vmatpush.msra.mxu0 %v425
    %446 = vmatmul.f32.gmra.mxu0 %v428
    %v447 = vpop.f32.mrf.mxu0
    %v448 = vadd.f32 0.0, %v447
    %449 = vdwg.mxu0
    %451 = vrot.lane.b32.xlu0 %v448, 16
    %v452 = vpop.permute.xlu0 %451
    %vm454 = vcmask 195712
    %455 = vst.msk [vmem:[#allocation2] sm:$0xff] %vm454, %v452
    %v456 = vmul.f32 %v448, %v448
    %v457 = vsel %vm109, %v456, 0.0
    %458 = vadd.xlane.f32.xlu0 %v457
    %v459 = vpop.xlane.xlu0 %458
    %460 = vxpose.xlu0.b32.start [1/16] %v459, 128
    %461 = vxpose.xlu0.b32.cont [2/16] 0.0, 128
    %462 = vxpose.xlu0.b32.cont [3/16] 0.0, 128
    %463 = vxpose.xlu0.b32.cont [4/16] 0.0, 128
    %464 = vxpose.xlu0.b32.cont [5/16] 0.0, 128
    %465 = vxpose.xlu0.b32.cont [6/16] 0.0, 128
    %466 = vxpose.xlu0.b32.cont [7/16] 0.0, 128
    %467 = vxpose.xlu0.b32.cont [8/16] 0.0, 128
    %468 = vxpose.xlu0.b32.cont [9/16] 0.0, 128
    %469 = vxpose.xlu0.b32.cont [10/16] 0.0, 128
    %470 = vxpose.xlu0.b32.cont [11/16] 0.0, 128
    %471 = vxpose.xlu0.b32.cont [12/16] 0.0, 128
    %472 = vxpose.xlu0.b32.cont [13/16] 0.0, 128
    %473 = vxpose.xlu0.b32.cont [14/16] 0.0, 128
    %474 = vxpose.xlu0.b32.cont [15/16] 0.0, 128
    %475 = vxpose.xlu0.b32.end [16/16] 0.0, 128
    %v476 = vpop.trf.xlu0
    %v477 = vpop.trf.xlu0
    %v478 = vpop.trf.xlu0
    %v479 = vpop.trf.xlu0
    %v480 = vpop.trf.xlu0
    %v481 = vpop.trf.xlu0
    %v482 = vpop.trf.xlu0
    %v483 = vpop.trf.xlu0
    %v484 = vpop.trf.xlu0
    %v485 = vpop.trf.xlu0
    %v486 = vpop.trf.xlu0
    %v487 = vpop.trf.xlu0
    %v488 = vpop.trf.xlu0
    %v489 = vpop.trf.xlu0
    %v490 = vpop.trf.xlu0
    %v491 = vpop.trf.xlu0
    %v492 = vrsqrt.pop %v476
    %v493 = vmul.f32 %v492, %v476
    %v494 = vmul.f32 %v493, %v492
    %v495 = vmul.f32 0.5, %v494
    %v496 = vsub.f32 1.5, %v495
    %v497 = vmul.f32 %v492, %v496
    %v498 = vmul.f32 %v476, %v497
    %vm499 = vcmp.eq.f32.partialorder %v476, inf
    %v500 = vsel %vm499, %v476, %v498
    %vm501 = vcmp.eq.f32.partialorder %v476, 0.0
    %v502 = vand.u32 %v476, 2147483648
    %v503 = vsel %vm501, %v502, %v500
    %v504 = vmul.f32 %v423, %v503
    %v505 = vadd.f32 %v370, %v504
    %v506 = vadd.f32 %v371, %v503
    %507 = vrot.lane.b32.xlu0 %v104, 104
    %v508 = vpop.permute.xlu0 %507
    %509 = vrot.lane.b32.xlu0 %v99, 72
    %v510 = vpop.permute.xlu0 %509
    %v511 = vsel %vm109, %v508, 0
    %v513 = vsel %vm109, %v510, 0
    %515 = vmatpush.xpose.msra.mxu0 0.0
    %516 = vmatpush.xpose.msra.mxu0 0.0
    %517 = vmatpush.xpose.msra.mxu0 0.0
    %518 = vmatpush.xpose.msra.mxu0 0.0
    %519 = vmatpush.xpose.msra.mxu0 0.0
    %520 = vmatpush.xpose.msra.mxu0 0.0
    %521 = vmatpush.xpose.msra.mxu0 0.0
    %522 = vmatpush.xpose.msra.mxu0 0.0
    %523 = vmatpush.xpose.msra.mxu0 0.0
    %524 = vmatpush.xpose.msra.mxu0 0.0
    %525 = vmatpush.xpose.msra.mxu0 0.0
    %526 = vmatpush.xpose.msra.mxu0 0.0
    %527 = vmatpush.xpose.msra.mxu0 0.0
    %528 = vmatpush.xpose.msra.mxu0 0.0
    %529 = vmatpush.xpose.msra.mxu0 0.0
    %530 = vmatpush.xpose.msra.mxu0 %v513
    %531 = vmatmul.f32.gmra.mxu0 %v511
    %v532 = vpop.f32.mrf.mxu0
    %v533 = vadd.f32 0.0, %v532
    %534 = vdwg.mxu0
    %v535 = vsel %vm109, %v533, -inf
    %536 = vmax.xlane.f32.xlu0 %v535
    %v537 = vpop.xlane.xlu0 %536
    %v538 = vsub.f32 %v533, %v537
    %v539 = vmul.f32 %v538, 1.442695
    %v540 = vpow.pop %v539
    %v541 = vsel %vm109, %v540, 0.0
    %542 = vadd.xlane.f32.xlu0 %v541
    %v543 = vpop.xlane.xlu0 %542
    %v544 = vrcp.pop %v543
    %v545 = vmul.f32 %v543, %v544
    %v546 = vsub.f32 1.0, %v545
    %v547 = vmul.f32 %v544, %v546
    %v548 = vadd.f32 %v544, %v547
    %vm549 = vweird.f32 %v543
    %vm550 = vweird.f32 %v544
    %vm551 = vmor %vm549, %vm550
    %v552 = vsel %vm551, %v544, %v548
    %v553 = vand.u32 2147483647, %v543
    %vm554 = vcmp.eq.f32.partialorder %v553, 8.507059e+37
    %v555 = vand.u32 %v543, 2147483648
    %v556 = vor.u32 1.1754944e-38, %v555
    %v557 = vsel %vm554, %v556, %v552
    %v558 = vmul.f32 %v540, %v557
    %559 = vrot.lane.b32.xlu0 %v99, 40
    %v560 = vpop.permute.xlu0 %559
    %v563 = vsel %vm109, %v558, 0
    %565 = vmatpush.msra.mxu0 0.0
    %566 = vmatpush.msra.mxu0 0.0
    %567 = vmatpush.msra.mxu0 0.0
    %568 = vmatpush.msra.mxu0 0.0
    %569 = vmatpush.msra.mxu0 0.0
    %570 = vmatpush.msra.mxu0 0.0
    %571 = vmatpush.msra.mxu0 0.0
    %572 = vmatpush.msra.mxu0 0.0
    %573 = vmatpush.msra.mxu0 0.0
    %574 = vmatpush.msra.mxu0 0.0
    %575 = vmatpush.msra.mxu0 0.0
    %576 = vmatpush.msra.mxu0 0.0
    %577 = vmatpush.msra.mxu0 0.0
    %578 = vmatpush.msra.mxu0 0.0
    %579 = vmatpush.msra.mxu0 0.0
    %580 = vmatpush.msra.mxu0 %v560
    %581 = vmatmul.f32.gmra.mxu0 %v563
    %v582 = vpop.f32.mrf.mxu0
    %v583 = vadd.f32 0.0, %v582
    %584 = vdwg.mxu0
    %586 = vrot.lane.b32.xlu0 %v583, 24
    %v587 = vpop.permute.xlu0 %586
    %vm589 = vcmask 261312
    %590 = vst.msk [vmem:[#allocation2] sm:$0xff] %vm589, %v587
    %v591 = vmul.f32 %v583, %v583
    %v592 = vsel %vm109, %v591, 0.0
    %593 = vadd.xlane.f32.xlu0 %v592
    %v594 = vpop.xlane.xlu0 %593
    %595 = vxpose.xlu0.b32.start [1/16] %v594, 128
    %596 = vxpose.xlu0.b32.cont [2/16] 0.0, 128
    %597 = vxpose.xlu0.b32.cont [3/16] 0.0, 128
    %598 = vxpose.xlu0.b32.cont [4/16] 0.0, 128
    %599 = vxpose.xlu0.b32.cont [5/16] 0.0, 128
    %600 = vxpose.xlu0.b32.cont [6/16] 0.0, 128
    %601 = vxpose.xlu0.b32.cont [7/16] 0.0, 128
    %602 = vxpose.xlu0.b32.cont [8/16] 0.0, 128
    %603 = vxpose.xlu0.b32.cont [9/16] 0.0, 128
    %604 = vxpose.xlu0.b32.cont [10/16] 0.0, 128
    %605 = vxpose.xlu0.b32.cont [11/16] 0.0, 128
    %606 = vxpose.xlu0.b32.cont [12/16] 0.0, 128
    %607 = vxpose.xlu0.b32.cont [13/16] 0.0, 128
    %608 = vxpose.xlu0.b32.cont [14/16] 0.0, 128
    %609 = vxpose.xlu0.b32.cont [15/16] 0.0, 128
    %610 = vxpose.xlu0.b32.end [16/16] 0.0, 128
    %v611 = vpop.trf.xlu0
    %v612 = vpop.trf.xlu0
    %v613 = vpop.trf.xlu0
    %v614 = vpop.trf.xlu0
    %v615 = vpop.trf.xlu0
    %v616 = vpop.trf.xlu0
    %v617 = vpop.trf.xlu0
    %v618 = vpop.trf.xlu0
    %v619 = vpop.trf.xlu0
    %v620 = vpop.trf.xlu0
    %v621 = vpop.trf.xlu0
    %v622 = vpop.trf.xlu0
    %v623 = vpop.trf.xlu0
    %v624 = vpop.trf.xlu0
    %v625 = vpop.trf.xlu0
    %v626 = vpop.trf.xlu0
    %v627 = vrsqrt.pop %v611
    %v628 = vmul.f32 %v627, %v611
    %v629 = vmul.f32 %v628, %v627
    %v630 = vmul.f32 0.5, %v629
    %v631 = vsub.f32 1.5, %v630
    %v632 = vmul.f32 %v627, %v631
    %v633 = vmul.f32 %v611, %v632
    %vm634 = vcmp.eq.f32.partialorder %v611, inf
    %v635 = vsel %vm634, %v611, %v633
    %vm636 = vcmp.eq.f32.partialorder %v611, 0.0
    %v637 = vand.u32 %v611, 2147483648
    %v638 = vsel %vm636, %v637, %v635
    %v639 = vmul.f32 %v558, %v638
    %v640 = vadd.f32 %v505, %v639
    %v641 = vadd.f32 %v506, %v638
    %v642 = vadd.f32 %v641, 1e-08
    %v643 = vrcp.pop %v642
    %v644 = vmul.f32 %v642, %v643
    %v645 = vsub.f32 1.0, %v644
    %v646 = vmul.f32 %v643, %v645
    %v647 = vadd.f32 %v643, %v646
    %vm648 = vweird.f32 %v642
    %vm649 = vweird.f32 %v643
    %vm650 = vmor %vm648, %vm649
    %v651 = vsel %vm650, %v643, %v647
    %v652 = vand.u32 2147483647, %v642
    %vm653 = vcmp.eq.f32.partialorder %v652, 8.507059e+37
    %v654 = vand.u32 %v642, 2147483648
    %v655 = vor.u32 1.1754944e-38, %v654
    %v656 = vsel %vm653, %v655, %v651
    %v657 = vmul.f32 %v640, %v656
    %v658 = vsel %vm109, %v657, 0.0
    %659 = vst [vmem:[#allocation10] sm:$0x1] %v658
    %661 = vrot.lane.b32.xlu0 %v102, 96
    %v662 = vpop.permute.xlu0 %661
    %v664 = vsel %vm109, %v105, 0
    %v666 = vsel %vm109, %v662, 0
    %668 = vmatpush.xpose.msra.mxu0 0.0
    %669 = vmatpush.xpose.msra.mxu0 0.0
    %670 = vmatpush.xpose.msra.mxu0 0.0
    %671 = vmatpush.xpose.msra.mxu0 0.0
    %672 = vmatpush.xpose.msra.mxu0 0.0
    %673 = vmatpush.xpose.msra.mxu0 0.0
    %674 = vmatpush.xpose.msra.mxu0 0.0
    %675 = vmatpush.xpose.msra.mxu0 0.0
    %676 = vmatpush.xpose.msra.mxu0 0.0
    %677 = vmatpush.xpose.msra.mxu0 0.0
    %678 = vmatpush.xpose.msra.mxu0 0.0
    %679 = vmatpush.xpose.msra.mxu0 0.0
    %680 = vmatpush.xpose.msra.mxu0 0.0
    %681 = vmatpush.xpose.msra.mxu0 0.0
    %682 = vmatpush.xpose.msra.mxu0 0.0
    %683 = vmatpush.xpose.msra.mxu0 %v666
    %684 = vmatmul.f32.gmra.mxu0 %v664
    %v685 = vpop.f32.mrf.mxu0
    %v686 = vadd.f32 0.0, %v685
    %687 = vdwg.mxu0
    %v688 = vsel %vm109, %v686, -inf
    %689 = vmax.xlane.f32.xlu0 %v688
    %v690 = vpop.xlane.xlu0 %689
    %v691 = vsub.f32 %v686, %v690
    %v692 = vmul.f32 %v691, 1.442695
    %v693 = vpow.pop %v692
    %v694 = vsel %vm109, %v693, 0.0
    %695 = vadd.xlane.f32.xlu0 %v694
    %v696 = vpop.xlane.xlu0 %695
    %v697 = vrcp.pop %v696
    %v698 = vmul.f32 %v696, %v697
    %v699 = vsub.f32 1.0, %v698
    %v700 = vmul.f32 %v697, %v699
    %v701 = vadd.f32 %v697, %v700
    %vm702 = vweird.f32 %v696
    %vm703 = vweird.f32 %v697
    %vm704 = vmor %vm702, %vm703
    %v705 = vsel %vm704, %v697, %v701
    %v706 = vand.u32 2147483647, %v696
    %vm707 = vcmp.eq.f32.partialorder %v706, 8.507059e+37
    %v708 = vand.u32 %v696, 2147483648
    %v709 = vor.u32 1.1754944e-38, %v708
    %v710 = vsel %vm707, %v709, %v705
    %v711 = vmul.f32 %v693, %v710
    %712 = vrot.lane.b32.xlu0 %v102, 64
    %v713 = vpop.permute.xlu0 %712
    %v716 = vsel %vm109, %v711, 0
    %718 = vmatpush.msra.mxu0 0.0
    %719 = vmatpush.msra.mxu0 0.0
    %720 = vmatpush.msra.mxu0 0.0
    %721 = vmatpush.msra.mxu0 0.0
    %722 = vmatpush.msra.mxu0 0.0
    %723 = vmatpush.msra.mxu0 0.0
    %724 = vmatpush.msra.mxu0 0.0
    %725 = vmatpush.msra.mxu0 0.0
    %726 = vmatpush.msra.mxu0 0.0
    %727 = vmatpush.msra.mxu0 0.0
    %728 = vmatpush.msra.mxu0 0.0
    %729 = vmatpush.msra.mxu0 0.0
    %730 = vmatpush.msra.mxu0 0.0
    %731 = vmatpush.msra.mxu0 0.0
    %732 = vmatpush.msra.mxu0 0.0
    %733 = vmatpush.msra.mxu0 %v713
    %734 = vmatmul.f32.gmra.mxu0 %v716
    %v735 = vpop.f32.mrf.mxu0
    %v736 = vadd.f32 0.0, %v735
    %737 = vdwg.mxu0
    %738 = vst.msk [vmem:[#allocation2 + $0x8] sm:$0xff] %vm109, %v736
    %v739 = vmul.f32 %v736, %v736
    %v740 = vsel %vm109, %v739, 0.0
    %741 = vadd.xlane.f32.xlu0 %v740
    %v742 = vpop.xlane.xlu0 %741
    %743 = vxpose.xlu0.b32.start [1/16] %v742, 128
    %744 = vxpose.xlu0.b32.cont [2/16] 0.0, 128
    %745 = vxpose.xlu0.b32.cont [3/16] 0.0, 128
    %746 = vxpose.xlu0.b32.cont [4/16] 0.0, 128
    %747 = vxpose.xlu0.b32.cont [5/16] 0.0, 128
    %748 = vxpose.xlu0.b32.cont [6/16] 0.0, 128
    %749 = vxpose.xlu0.b32.cont [7/16] 0.0, 128
    %750 = vxpose.xlu0.b32.cont [8/16] 0.0, 128
    %751 = vxpose.xlu0.b32.cont [9/16] 0.0, 128
    %752 = vxpose.xlu0.b32.cont [10/16] 0.0, 128
    %753 = vxpose.xlu0.b32.cont [11/16] 0.0, 128
    %754 = vxpose.xlu0.b32.cont [12/16] 0.0, 128
    %755 = vxpose.xlu0.b32.cont [13/16] 0.0, 128
    %756 = vxpose.xlu0.b32.cont [14/16] 0.0, 128
    %757 = vxpose.xlu0.b32.cont [15/16] 0.0, 128
    %758 = vxpose.xlu0.b32.end [16/16] 0.0, 128
    %v759 = vpop.trf.xlu0
    %v760 = vpop.trf.xlu0
    %v761 = vpop.trf.xlu0
    %v762 = vpop.trf.xlu0
    %v763 = vpop.trf.xlu0
    %v764 = vpop.trf.xlu0
    %v765 = vpop.trf.xlu0
    %v766 = vpop.trf.xlu0
    %v767 = vpop.trf.xlu0
    %v768 = vpop.trf.xlu0
    %v769 = vpop.trf.xlu0
    %v770 = vpop.trf.xlu0
    %v771 = vpop.trf.xlu0
    %v772 = vpop.trf.xlu0
    %v773 = vpop.trf.xlu0
    %v774 = vpop.trf.xlu0
    %v775 = vrsqrt.pop %v759
    %v776 = vmul.f32 %v775, %v759
    %v777 = vmul.f32 %v776, %v775
    %v778 = vmul.f32 0.5, %v777
    %v779 = vsub.f32 1.5, %v778
    %v780 = vmul.f32 %v775, %v779
    %v781 = vmul.f32 %v759, %v780
    %vm782 = vcmp.eq.f32.partialorder %v759, inf
    %v783 = vsel %vm782, %v759, %v781
    %vm784 = vcmp.eq.f32.partialorder %v759, 0.0
    %v785 = vand.u32 %v759, 2147483648
    %v786 = vsel %vm784, %v785, %v783
    %v787 = vmul.f32 %v711, %v786
    %v788 = vadd.f32 %v787, 0.0
    %v789 = vadd.f32 %v786, 0.0
    %790 = vrot.lane.b32.xlu0 %v105, 120
    %v791 = vpop.permute.xlu0 %790
    %792 = vrot.lane.b32.xlu0 %v102, 88
    %v793 = vpop.permute.xlu0 %792
    %v794 = vsel %vm109, %v791, 0
    %v796 = vsel %vm109, %v793, 0
    %798 = vmatpush.xpose.msra.mxu0 0.0
    %799 = vmatpush.xpose.msra.mxu0 0.0
    %800 = vmatpush.xpose.msra.mxu0 0.0
    %801 = vmatpush.xpose.msra.mxu0 0.0
    %802 = vmatpush.xpose.msra.mxu0 0.0
    %803 = vmatpush.xpose.msra.mxu0 0.0
    %804 = vmatpush.xpose.msra.mxu0 0.0
    %805 = vmatpush.xpose.msra.mxu0 0.0
    %806 = vmatpush.xpose.msra.mxu0 0.0
    %807 = vmatpush.xpose.msra.mxu0 0.0
    %808 = vmatpush.xpose.msra.mxu0 0.0
    %809 = vmatpush.xpose.msra.mxu0 0.0
    %810 = vmatpush.xpose.msra.mxu0 0.0
    %811 = vmatpush.xpose.msra.mxu0 0.0
    %812 = vmatpush.xpose.msra.mxu0 0.0
    %813 = vmatpush.xpose.msra.mxu0 %v796
    %814 = vmatmul.f32.gmra.mxu0 %v794
    %v815 = vpop.f32.mrf.mxu0
    %v816 = vadd.f32 0.0, %v815
    %817 = vdwg.mxu0
    %v818 = vsel %vm109, %v816, -inf
    %819 = vmax.xlane.f32.xlu0 %v818
    %v820 = vpop.xlane.xlu0 %819
    %v821 = vsub.f32 %v816, %v820
    %v822 = vmul.f32 %v821, 1.442695
    %v823 = vpow.pop %v822
    %v824 = vsel %vm109, %v823, 0.0
    %825 = vadd.xlane.f32.xlu0 %v824
    %v826 = vpop.xlane.xlu0 %825
    %v827 = vrcp.pop %v826
    %v828 = vmul.f32 %v826, %v827
    %v829 = vsub.f32 1.0, %v828
    %v830 = vmul.f32 %v827, %v829
    %v831 = vadd.f32 %v827, %v830
    %vm832 = vweird.f32 %v826
    %vm833 = vweird.f32 %v827
    %vm834 = vmor %vm832, %vm833
    %v835 = vsel %vm834, %v827, %v831
    %v836 = vand.u32 2147483647, %v826
    %vm837 = vcmp.eq.f32.partialorder %v836, 8.507059e+37
    %v838 = vand.u32 %v826, 2147483648
    %v839 = vor.u32 1.1754944e-38, %v838
    %v840 = vsel %vm837, %v839, %v835
    %v841 = vmul.f32 %v823, %v840
    %842 = vrot.lane.b32.xlu0 %v102, 56
    %v843 = vpop.permute.xlu0 %842
    %v846 = vsel %vm109, %v841, 0
    %848 = vmatpush.msra.mxu0 0.0
    %849 = vmatpush.msra.mxu0 0.0
    %850 = vmatpush.msra.mxu0 0.0
    %851 = vmatpush.msra.mxu0 0.0
    %852 = vmatpush.msra.mxu0 0.0
    %853 = vmatpush.msra.mxu0 0.0
    %854 = vmatpush.msra.mxu0 0.0
    %855 = vmatpush.msra.mxu0 0.0
    %856 = vmatpush.msra.mxu0 0.0
    %857 = vmatpush.msra.mxu0 0.0
    %858 = vmatpush.msra.mxu0 0.0
    %859 = vmatpush.msra.mxu0 0.0
    %860 = vmatpush.msra.mxu0 0.0
    %861 = vmatpush.msra.mxu0 0.0
    %862 = vmatpush.msra.mxu0 0.0
    %863 = vmatpush.msra.mxu0 %v843
    %864 = vmatmul.f32.gmra.mxu0 %v846
    %v865 = vpop.f32.mrf.mxu0
    %v866 = vadd.f32 0.0, %v865
    %867 = vdwg.mxu0
    %869 = vrot.lane.b32.xlu0 %v866, 8
    %v870 = vpop.permute.xlu0 %869
    %872 = vst.msk [vmem:[#allocation2 + $0x8] sm:$0xff] %vm319, %v870
    %v873 = vmul.f32 %v866, %v866
    %v874 = vsel %vm109, %v873, 0.0
    %875 = vadd.xlane.f32.xlu0 %v874
    %v876 = vpop.xlane.xlu0 %875
    %877 = vxpose.xlu0.b32.start [1/16] %v876, 128
    %878 = vxpose.xlu0.b32.cont [2/16] 0.0, 128
    %879 = vxpose.xlu0.b32.cont [3/16] 0.0, 128
    %880 = vxpose.xlu0.b32.cont [4/16] 0.0, 128
    %881 = vxpose.xlu0.b32.cont [5/16] 0.0, 128
    %882 = vxpose.xlu0.b32.cont [6/16] 0.0, 128
    %883 = vxpose.xlu0.b32.cont [7/16] 0.0, 128
    %884 = vxpose.xlu0.b32.cont [8/16] 0.0, 128
    %885 = vxpose.xlu0.b32.cont [9/16] 0.0, 128
    %886 = vxpose.xlu0.b32.cont [10/16] 0.0, 128
    %887 = vxpose.xlu0.b32.cont [11/16] 0.0, 128
    %888 = vxpose.xlu0.b32.cont [12/16] 0.0, 128
    %889 = vxpose.xlu0.b32.cont [13/16] 0.0, 128
    %890 = vxpose.xlu0.b32.cont [14/16] 0.0, 128
    %891 = vxpose.xlu0.b32.cont [15/16] 0.0, 128
    %892 = vxpose.xlu0.b32.end [16/16] 0.0, 128
    %v893 = vpop.trf.xlu0
    %v894 = vpop.trf.xlu0
    %v895 = vpop.trf.xlu0
    %v896 = vpop.trf.xlu0
    %v897 = vpop.trf.xlu0
    %v898 = vpop.trf.xlu0
    %v899 = vpop.trf.xlu0
    %v900 = vpop.trf.xlu0
    %v901 = vpop.trf.xlu0
    %v902 = vpop.trf.xlu0
    %v903 = vpop.trf.xlu0
    %v904 = vpop.trf.xlu0
    %v905 = vpop.trf.xlu0
    %v906 = vpop.trf.xlu0
    %v907 = vpop.trf.xlu0
    %v908 = vpop.trf.xlu0
    %v909 = vrsqrt.pop %v893
    %v910 = vmul.f32 %v909, %v893
    %v911 = vmul.f32 %v910, %v909
    %v912 = vmul.f32 0.5, %v911
    %v913 = vsub.f32 1.5, %v912
    %v914 = vmul.f32 %v909, %v913
    %v915 = vmul.f32 %v893, %v914
    %vm916 = vcmp.eq.f32.partialorder %v893, inf
    %v917 = vsel %vm916, %v893, %v915
    %vm918 = vcmp.eq.f32.partialorder %v893, 0.0
    %v919 = vand.u32 %v893, 2147483648
    %v920 = vsel %vm918, %v919, %v917
    %v921 = vmul.f32 %v841, %v920
    %v922 = vadd.f32 %v788, %v921
    %v923 = vadd.f32 %v789, %v920
    %924 = vrot.lane.b32.xlu0 %v105, 112
    %v925 = vpop.permute.xlu0 %924
    %926 = vrot.lane.b32.xlu0 %v102, 80
    %v927 = vpop.permute.xlu0 %926
    %v928 = vsel %vm109, %v925, 0
    %v930 = vsel %vm109, %v927, 0
    %932 = vmatpush.xpose.msra.mxu0 0.0
    %933 = vmatpush.xpose.msra.mxu0 0.0
    %934 = vmatpush.xpose.msra.mxu0 0.0
    %935 = vmatpush.xpose.msra.mxu0 0.0
    %936 = vmatpush.xpose.msra.mxu0 0.0
    %937 = vmatpush.xpose.msra.mxu0 0.0
    %938 = vmatpush.xpose.msra.mxu0 0.0
    %939 = vmatpush.xpose.msra.mxu0 0.0
    %940 = vmatpush.xpose.msra.mxu0 0.0
    %941 = vmatpush.xpose.msra.mxu0 0.0
    %942 = vmatpush.xpose.msra.mxu0 0.0
    %943 = vmatpush.xpose.msra.mxu0 0.0
    %944 = vmatpush.xpose.msra.mxu0 0.0
    %945 = vmatpush.xpose.msra.mxu0 0.0
    %946 = vmatpush.xpose.msra.mxu0 0.0
    %947 = vmatpush.xpose.msra.mxu0 %v930
    %948 = vmatmul.f32.gmra.mxu0 %v928
    %v949 = vpop.f32.mrf.mxu0
    %v950 = vadd.f32 0.0, %v949
    %951 = vdwg.mxu0
    %v952 = vsel %vm109, %v950, -inf
    %953 = vmax.xlane.f32.xlu0 %v952
    %v954 = vpop.xlane.xlu0 %953
    %v955 = vsub.f32 %v950, %v954
    %v956 = vmul.f32 %v955, 1.442695
    %v957 = vpow.pop %v956
    %v958 = vsel %vm109, %v957, 0.0
    %959 = vadd.xlane.f32.xlu0 %v958
    %v960 = vpop.xlane.xlu0 %959
    %v961 = vrcp.pop %v960
    %v962 = vmul.f32 %v960, %v961
    %v963 = vsub.f32 1.0, %v962
    %v964 = vmul.f32 %v961, %v963
    %v965 = vadd.f32 %v961, %v964
    %vm966 = vweird.f32 %v960
    %vm967 = vweird.f32 %v961
    %vm968 = vmor %vm966, %vm967
    %v969 = vsel %vm968, %v961, %v965
    %v970 = vand.u32 2147483647, %v960
    %vm971 = vcmp.eq.f32.partialorder %v970, 8.507059e+37
    %v972 = vand.u32 %v960, 2147483648
    %v973 = vor.u32 1.1754944e-38, %v972
    %v974 = vsel %vm971, %v973, %v969
    %v975 = vmul.f32 %v957, %v974
    %976 = vrot.lane.b32.xlu0 %v102, 48
    %v977 = vpop.permute.xlu0 %976
    %v980 = vsel %vm109, %v975, 0
    %982 = vmatpush.msra.mxu0 0.0
    %983 = vmatpush.msra.mxu0 0.0
    %984 = vmatpush.msra.mxu0 0.0
    %985 = vmatpush.msra.mxu0 0.0
    %986 = vmatpush.msra.mxu0 0.0
    %987 = vmatpush.msra.mxu0 0.0
    %988 = vmatpush.msra.mxu0 0.0
    %989 = vmatpush.msra.mxu0 0.0
    %990 = vmatpush.msra.mxu0 0.0
    %991 = vmatpush.msra.mxu0 0.0
    %992 = vmatpush.msra.mxu0 0.0
    %993 = vmatpush.msra.mxu0 0.0
    %994 = vmatpush.msra.mxu0 0.0
    %995 = vmatpush.msra.mxu0 0.0
    %996 = vmatpush.msra.mxu0 0.0
    %997 = vmatpush.msra.mxu0 %v977
    %998 = vmatmul.f32.gmra.mxu0 %v980
    %v999 = vpop.f32.mrf.mxu0
    %v1000 = vadd.f32 0.0, %v999
    %1001 = vdwg.mxu0
    %1003 = vrot.lane.b32.xlu0 %v1000, 16
    %v1004 = vpop.permute.xlu0 %1003
    %1006 = vst.msk [vmem:[#allocation2 + $0x8] sm:$0xff] %vm454, %v1004
    %v1007 = vmul.f32 %v1000, %v1000
    %v1008 = vsel %vm109, %v1007, 0.0
    %1009 = vadd.xlane.f32.xlu0 %v1008
    %v1010 = vpop.xlane.xlu0 %1009
    %1011 = vxpose.xlu0.b32.start [1/16] %v1010, 128
    %1012 = vxpose.xlu0.b32.cont [2/16] 0.0, 128
    %1013 = vxpose.xlu0.b32.cont [3/16] 0.0, 128
    %1014 = vxpose.xlu0.b32.cont [4/16] 0.0, 128
    %1015 = vxpose.xlu0.b32.cont [5/16] 0.0, 128
    %1016 = vxpose.xlu0.b32.cont [6/16] 0.0, 128
    %1017 = vxpose.xlu0.b32.cont [7/16] 0.0, 128
    %1018 = vxpose.xlu0.b32.cont [8/16] 0.0, 128
    %1019 = vxpose.xlu0.b32.cont [9/16] 0.0, 128
    %1020 = vxpose.xlu0.b32.cont [10/16] 0.0, 128
    %1021 = vxpose.xlu0.b32.cont [11/16] 0.0, 128
    %1022 = vxpose.xlu0.b32.cont [12/16] 0.0, 128
    %1023 = vxpose.xlu0.b32.cont [13/16] 0.0, 128
    %1024 = vxpose.xlu0.b32.cont [14/16] 0.0, 128
    %1025 = vxpose.xlu0.b32.cont [15/16] 0.0, 128
    %1026 = vxpose.xlu0.b32.end [16/16] 0.0, 128
    %v1027 = vpop.trf.xlu0
    %v1028 = vpop.trf.xlu0
    %v1029 = vpop.trf.xlu0
    %v1030 = vpop.trf.xlu0
    %v1031 = vpop.trf.xlu0
    %v1032 = vpop.trf.xlu0
    %v1033 = vpop.trf.xlu0
    %v1034 = vpop.trf.xlu0
    %v1035 = vpop.trf.xlu0
    %v1036 = vpop.trf.xlu0
    %v1037 = vpop.trf.xlu0
    %v1038 = vpop.trf.xlu0
    %v1039 = vpop.trf.xlu0
    %v1040 = vpop.trf.xlu0
    %v1041 = vpop.trf.xlu0
    %v1042 = vpop.trf.xlu0
    %v1043 = vrsqrt.pop %v1027
    %v1044 = vmul.f32 %v1043, %v1027
    %v1045 = vmul.f32 %v1044, %v1043
    %v1046 = vmul.f32 0.5, %v1045
    %v1047 = vsub.f32 1.5, %v1046
    %v1048 = vmul.f32 %v1043, %v1047
    %v1049 = vmul.f32 %v1027, %v1048
    %vm1050 = vcmp.eq.f32.partialorder %v1027, inf
    %v1051 = vsel %vm1050, %v1027, %v1049
    %vm1052 = vcmp.eq.f32.partialorder %v1027, 0.0
    %v1053 = vand.u32 %v1027, 2147483648
    %v1054 = vsel %vm1052, %v1053, %v1051
    %v1055 = vmul.f32 %v975, %v1054
    %v1056 = vadd.f32 %v922, %v1055
    %v1057 = vadd.f32 %v923, %v1054
    %1058 = vrot.lane.b32.xlu0 %v105, 104
    %v1059 = vpop.permute.xlu0 %1058
    %1060 = vrot.lane.b32.xlu0 %v102, 72
    %v1061 = vpop.permute.xlu0 %1060
    %v1062 = vsel %vm109, %v1059, 0
    %v1064 = vsel %vm109, %v1061, 0
    %1066 = vmatpush.xpose.msra.mxu0 0.0
    %1067 = vmatpush.xpose.msra.mxu0 0.0
    %1068 = vmatpush.xpose.msra.mxu0 0.0
    %1069 = vmatpush.xpose.msra.mxu0 0.0
    %1070 = vmatpush.xpose.msra.mxu0 0.0
    %1071 = vmatpush.xpose.msra.mxu0 0.0
    %1072 = vmatpush.xpose.msra.mxu0 0.0
    %1073 = vmatpush.xpose.msra.mxu0 0.0
    %1074 = vmatpush.xpose.msra.mxu0 0.0
    %1075 = vmatpush.xpose.msra.mxu0 0.0
    %1076 = vmatpush.xpose.msra.mxu0 0.0
    %1077 = vmatpush.xpose.msra.mxu0 0.0
    %1078 = vmatpush.xpose.msra.mxu0 0.0
    %1079 = vmatpush.xpose.msra.mxu0 0.0
    %1080 = vmatpush.xpose.msra.mxu0 0.0
    %1081 = vmatpush.xpose.msra.mxu0 %v1064
    %1082 = vmatmul.f32.gmra.mxu0 %v1062
    %v1083 = vpop.f32.mrf.mxu0
    %v1084 = vadd.f32 0.0, %v1083
    %1085 = vdwg.mxu0
    %v1086 = vsel %vm109, %v1084, -inf
    %1087 = vmax.xlane.f32.xlu0 %v1086
    %v1088 = vpop.xlane.xlu0 %1087
    %v1089 = vsub.f32 %v1084, %v1088
    %v1090 = vmul.f32 %v1089, 1.442695
    %v1091 = vpow.pop %v1090
    %v1092 = vsel %vm109, %v1091, 0.0
    %1093 = vadd.xlane.f32.xlu0 %v1092
    %v1094 = vpop.xlane.xlu0 %1093
    %v1095 = vrcp.pop %v1094
    %v1096 = vmul.f32 %v1094, %v1095
    %v1097 = vsub.f32 1.0, %v1096
    %v1098 = vmul.f32 %v1095, %v1097
    %v1099 = vadd.f32 %v1095, %v1098
    %vm1100 = vweird.f32 %v1094
    %vm1101 = vweird.f32 %v1095
    %vm1102 = vmor %vm1100, %vm1101
    %v1103 = vsel %vm1102, %v1095, %v1099
    %v1104 = vand.u32 2147483647, %v1094
    %vm1105 = vcmp.eq.f32.partialorder %v1104, 8.507059e+37
    %v1106 = vand.u32 %v1094, 2147483648
    %v1107 = vor.u32 1.1754944e-38, %v1106
    %v1108 = vsel %vm1105, %v1107, %v1103
    %v1109 = vmul.f32 %v1091, %v1108
    %1110 = vrot.lane.b32.xlu0 %v102, 40
    %v1111 = vpop.permute.xlu0 %1110
    %v1114 = vsel %vm109, %v1109, 0
    %1116 = vmatpush.msra.mxu0 0.0
    %1117 = vmatpush.msra.mxu0 0.0
    %1118 = vmatpush.msra.mxu0 0.0
    %1119 = vmatpush.msra.mxu0 0.0
    %1120 = vmatpush.msra.mxu0 0.0
    %1121 = vmatpush.msra.mxu0 0.0
    %1122 = vmatpush.msra.mxu0 0.0
    %1123 = vmatpush.msra.mxu0 0.0
    %1124 = vmatpush.msra.mxu0 0.0
    %1125 = vmatpush.msra.mxu0 0.0
    %1126 = vmatpush.msra.mxu0 0.0
    %1127 = vmatpush.msra.mxu0 0.0
    %1128 = vmatpush.msra.mxu0 0.0
    %1129 = vmatpush.msra.mxu0 0.0
    %1130 = vmatpush.msra.mxu0 0.0
    %1131 = vmatpush.msra.mxu0 %v1111
    %1132 = vmatmul.f32.gmra.mxu0 %v1114
    %v1133 = vpop.f32.mrf.mxu0
    %v1134 = vadd.f32 0.0, %v1133
    %1135 = vdwg.mxu0
    %1137 = vrot.lane.b32.xlu0 %v1134, 24
    %v1138 = vpop.permute.xlu0 %1137
    %1140 = vst.msk [vmem:[#allocation2 + $0x8] sm:$0xff] %vm589, %v1138
    %v1141 = vmul.f32 %v1134, %v1134
    %v1142 = vsel %vm109, %v1141, 0.0
    %1143 = vadd.xlane.f32.xlu0 %v1142
    %v1144 = vpop.xlane.xlu0 %1143
    %1145 = vxpose.xlu0.b32.start [1/16] %v1144, 128
    %1146 = vxpose.xlu0.b32.cont [2/16] 0.0, 128
    %1147 = vxpose.xlu0.b32.cont [3/16] 0.0, 128
    %1148 = vxpose.xlu0.b32.cont [4/16] 0.0, 128
    %1149 = vxpose.xlu0.b32.cont [5/16] 0.0, 128
    %1150 = vxpose.xlu0.b32.cont [6/16] 0.0, 128
    %1151 = vxpose.xlu0.b32.cont [7/16] 0.0, 128
    %1152 = vxpose.xlu0.b32.cont [8/16] 0.0, 128
    %1153 = vxpose.xlu0.b32.cont [9/16] 0.0, 128
    %1154 = vxpose.xlu0.b32.cont [10/16] 0.0, 128
    %1155 = vxpose.xlu0.b32.cont [11/16] 0.0, 128
    %1156 = vxpose.xlu0.b32.cont [12/16] 0.0, 128
    %1157 = vxpose.xlu0.b32.cont [13/16] 0.0, 128
    %1158 = vxpose.xlu0.b32.cont [14/16] 0.0, 128
    %1159 = vxpose.xlu0.b32.cont [15/16] 0.0, 128
    %1160 = vxpose.xlu0.b32.end [16/16] 0.0, 128
    %v1161 = vpop.trf.xlu0
    %v1162 = vpop.trf.xlu0
    %v1163 = vpop.trf.xlu0
    %v1164 = vpop.trf.xlu0
    %v1165 = vpop.trf.xlu0
    %v1166 = vpop.trf.xlu0
    %v1167 = vpop.trf.xlu0
    %v1168 = vpop.trf.xlu0
    %v1169 = vpop.trf.xlu0
    %v1170 = vpop.trf.xlu0
    %v1171 = vpop.trf.xlu0
    %v1172 = vpop.trf.xlu0
    %v1173 = vpop.trf.xlu0
    %v1174 = vpop.trf.xlu0
    %v1175 = vpop.trf.xlu0
    %v1176 = vpop.trf.xlu0
    %v1177 = vrsqrt.pop %v1161
    %v1178 = vmul.f32 %v1177, %v1161
    %v1179 = vmul.f32 %v1178, %v1177
    %v1180 = vmul.f32 0.5, %v1179
    %v1181 = vsub.f32 1.5, %v1180
    %v1182 = vmul.f32 %v1177, %v1181
    %v1183 = vmul.f32 %v1161, %v1182
    %vm1184 = vcmp.eq.f32.partialorder %v1161, inf
    %v1185 = vsel %vm1184, %v1161, %v1183
    %vm1186 = vcmp.eq.f32.partialorder %v1161, 0.0
    %v1187 = vand.u32 %v1161, 2147483648
    %v1188 = vsel %vm1186, %v1187, %v1185
    %v1189 = vmul.f32 %v1109, %v1188
    %v1190 = vadd.f32 %v1056, %v1189
    %v1191 = vadd.f32 %v1057, %v1188
    %v1192 = vadd.f32 %v1191, 1e-08
    %v1193 = vrcp.pop %v1192
    %v1194 = vmul.f32 %v1192, %v1193
    %v1195 = vsub.f32 1.0, %v1194
    %v1196 = vmul.f32 %v1193, %v1195
    %v1197 = vadd.f32 %v1193, %v1196
    %vm1198 = vweird.f32 %v1192
    %vm1199 = vweird.f32 %v1193
    %vm1200 = vmor %vm1198, %vm1199
    %v1201 = vsel %vm1200, %v1193, %v1197
    %v1202 = vand.u32 2147483647, %v1192
    %vm1203 = vcmp.eq.f32.partialorder %v1202, 8.507059e+37
    %v1204 = vand.u32 %v1192, 2147483648
    %v1205 = vor.u32 1.1754944e-38, %v1204
    %v1206 = vsel %vm1203, %v1205, %v1201
    %v1207 = vmul.f32 %v1190, %v1206
    %v1208 = vsel %vm109, %v1207, 0.0
    %s1209 = scalar_lea.vmem [#allocation10], 1
    %1210 = vst [vmem:[%s1209] sm:$0x1] %v1208
    %v1211 = vld [vmem:[#allocation2] sm:$0xff]
    %v1212 = vld [vmem:[#allocation2 + $0x8] sm:$0xff]
    %v1213 = vld [vmem:[#allocation8] sm:$0xff]
    %v1214 = vld [vmem:[#allocation8 + $0x8] sm:$0xff]
    %v1215 = vld [vmem:[#allocation8 + $0x10] sm:$0xff]
    %v1216 = vld [vmem:[#allocation8 + $0x18] sm:$0xff]
    %v1217 = vld [vmem:[%s3] sm:$0x1]
    %v1219 = vperm.slane %v1217, 0
    %v1222 = vsel %vm74, %v1211, 0
    %v1225 = vsel %vm74, %v1212, 0
    %1227 = vmatpush.msra.mxu0 0.0
    %1228 = vmatpush.msra.mxu0 0.0
    %1229 = vmatpush.msra.mxu0 0.0
    %1230 = vmatpush.msra.mxu0 0.0
    %1231 = vmatpush.msra.mxu0 0.0
    %1232 = vmatpush.msra.mxu0 0.0
    %1233 = vmatpush.msra.mxu0 0.0
    %1234 = vmatpush.msra.mxu0 0.0
    %1235 = vmatpush.msra.mxu0 0.0
    %1236 = vmatpush.msra.mxu0 0.0
    %1237 = vmatpush.msra.mxu0 0.0
    %1238 = vmatpush.msra.mxu0 0.0
    %1239 = vmatpush.msra.mxu0 %v1216
    %1240 = vmatpush.msra.mxu0 %v1215
    %1241 = vmatpush.msra.mxu0 %v1214
    %1242 = vmatpush.msra.mxu0 %v1213
    %1243 = vmatmul.f32.gmra.mxu0 %v1222
    %v1244 = vpop.f32.mrf.mxu0
    %v1245 = vadd.f32 %v1219, %v1244
    %1246 = vmatmul.f32.gmra.mxu0 %v1225
    %v1247 = vpop.f32.mrf.mxu0
    %v1248 = vadd.f32 %v1219, %v1247
    %1249 = vdwg.mxu0
    %1250 = vst.msk [vmem:[#allocation9] sm:$0xff] %vm74, %v1245
    %1251 = vst.msk [vmem:[#allocation9 + $0x8] sm:$0xff] %vm74, %v1248
    // Predicated region
    $region30: #{tpu_custom_call.1} parent=1 // pred_check
      _
    $region31: #{tpu_custom_call.1} parent=1 // pred_check_branch
      %1253 = sbr.rel (0) target = $region33
    $region32: #{tpu_custom_call.1} parent=1 // pred_region
      %1255 = vsyncadd [#allocation5], 0
      %s1256 = sshll.u32 [#allocation9], 4
      %s1257 = int_to_ptr.vmem [resolvable:$true] %s1256
      %s1258 = sshll.u32 %s4, 4
      %s1259 = int_to_ptr.hbm [resolvable:$true] %s1258
      %1264 = dma.vmem_to_hbm [thread:$0]  %s1257, 256, %s1259, [#allocation5], 128, 128, 8
    $region33: #{tpu_custom_call.1} parent=1 // pred_fallthru
      _
    // Predicated region
    $region34: #{tpu_custom_call.1} parent=1 // pred_check
      _
    $region35: #{tpu_custom_call.1} parent=1 // pred_check_branch
      %1266 = sbr.rel (0) target = $region37
    $region36: #{tpu_custom_call.1} parent=1 // pred_region
      %1268 = vsyncadd [#allocation11], 0
      %s1269 = sshll.u32 [#allocation10], 4
      %s1270 = int_to_ptr.vmem [resolvable:$true] %s1269
      %s1271 = sshll.u32 %s5, 4
      %s1272 = int_to_ptr.hbm [resolvable:$true] %s1271
      %1277 = dma.vmem_to_hbm [thread:$0]  %s1270, 32, %s1272, [#allocation11], 16, 16, 1
    $region37: #{tpu_custom_call.1} parent=1 // pred_fallthru
      _
    // Predicated region
    $region38: #{tpu_custom_call.1} parent=1 // pred_check
      _
    $region39: #{tpu_custom_call.1} parent=1 // pred_check_branch
      %1279 = sbr.rel (0) target = $region41
    $region40: #{tpu_custom_call.1} parent=1 // pred_region
      %1281 = dma.done [#allocation5], 256
    $region41: #{tpu_custom_call.1} parent=1 // pred_fallthru
      _
    // Predicated region
    $region42: #{tpu_custom_call.1} parent=1 // pred_check
      _
    $region43: #{tpu_custom_call.1} parent=1 // pred_check_branch
      %1283 = sbr.rel (0) target = $region45
    $region44: #{tpu_custom_call.1} parent=1 // pred_region
      %1285 = dma.done [#allocation11], 32
    $region45: #{tpu_custom_call.1} parent=1 // pred_fallthru
      _
    %1286 = vsyncpa [#allocation4], 1
    %1287 = vsyncpa [#allocation7], 1
    %1288 = vsyncpa [#allocation5], 1
    %1289 = vsyncpa [#allocation11], 1

</llo_original>
